<compile_context>
chip_gen: v6e
topology: v6e:2x2x1
jax: 0.10.0
libtpu: 0.0.40
codegen_flags: <defaults>
</compile_context>

<pallas_src>
import functools

import jax
import jax.numpy as jnp
from jax import lax
from jax.experimental import pallas as pl
from jax.experimental.pallas import tpu as pltpu


def _round_up(x: int, m: int) -> int:
    return (x + m - 1) // m * m


def _choose_batch_block(b: int) -> int:
    """Batch rows per grid shard: fill MXU rows, keep >=2 shards when batch allows."""
    b8 = _round_up(max(b, 1), 8)
    bb = min(128, b8)
    # v7x has 2 TensorCores; prefer >= 2 shards on the "parallel" batch axis when the
    # real batch is big enough to split (single-TC v5e/v6e: harmless).
    if b8 // bb < 2 and b8 >= 16:
        bb = max(8, (b8 // 2) // 8 * 8)
    return bb


def _vmem_bytes_estimate(bb: int, ts: int, e: int, hp: int) -> int:
    """Rough f32 VMEM footprint of the pipelined blocks + scratch."""
    f32 = 4
    return f32 * (
        2 * bb * ts * e        # x block (double buffered)
        + 2 * bb * ts * hp     # out block (double buffered)
        + 2 * hp * hp          # W_hh^T (conservatively assume double buffered)
        + 2 * e * hp           # W_ih^T
        + 2 * hp               # bias
        + 2 * bb * hp          # final-hidden output
        + bb * hp              # h carry scratch
        + 2 * bb               # lengths
    ) + (4 << 20)              # headroom for in-kernel temporaries


def _rnn_block_kernel(nt_ref, len_ref, x_ref, wih_ref, bias_ref, whh_ref,
                      out_ref, hfin_ref, h_scratch, *, ts):
    """One grid step == TS timesteps of the recurrence for one batch shard.

    grid = (batch_shards, time_blocks); time is innermost (serial recurrence).

    nt_ref    : (n_shards,)  int32 SMEM  active time blocks per shard (scalar prefetch)
    len_ref   : (BB, 1)      int32 VMEM  sequence lengths for this batch shard
    x_ref     : (BB, TS, E)  f32   VMEM  raw inputs for this (batch, time) block
    wih_ref   : (E, Hp)      f32   VMEM  W_ih^T           (resident across the grid)
    bias_ref  : (1, Hp)      f32   VMEM  b_ih + b_hh      (resident)
    whh_ref   : (Hp, Hp)     f32   VMEM  W_hh^T           (resident)
    out_ref   : (BB, TS, Hp) f32   VMEM  padded per-step outputs
    hfin_ref  : (BB, Hp)     f32   VMEM  final hidden state (resident across time blocks)
    h_scratch : (BB, Hp)     f32   VMEM  hidden-state carry across time blocks
    """
    b_blk = pl.program_id(0)
    t_blk = pl.program_id(1)

    @pl.when(t_blk == 0)
    def _():
        # rnn.init_state(B) -> zeros, once per batch shard.
        h_scratch[...] = jnp.zeros_like(h_scratch)
        hfin_ref[...] = jnp.zeros_like(hfin_ref)

    # Skip time blocks past the longest sequence of this shard.
    active = t_blk < nt_ref[b_blk]

    @pl.when(active)
    def _():
        lengths = len_ref[...]                                    # (BB, 1) int32
        t0 = t_blk * ts
        # Per-block masks, built once (iota + 2 compares), sliced per step below.
        step = t0 + lax.broadcasted_iota(jnp.int32, (1, ts), 1)   # (1, TS)
        valid = lengths > step                                    # (BB, TS)
        is_last = lengths == step + 1                             # (BB, TS)

        wih = wih_ref[...]
        whh = whh_ref[...]
        bias = bias_ref[...]                                      # (1, Hp)

        h = h_scratch[...]                                        # (BB, Hp)
        hfin = hfin_ref[...]
        # Statically unrolled recurrence: one basic block, so the independent
        # x-projection matmuls overlap with the serial dot(h,Whh)->tanh chain.
        for tt in range(ts):
            xp = jnp.dot(x_ref[:, tt, :], wih,
                         preferred_element_type=jnp.float32) + bias
            h = jnp.tanh(xp + jnp.dot(h, whh,
                                      preferred_element_type=jnp.float32))
            # pad_packed_sequence pads with zeros past each row's length.
            out_ref[:, tt, :] = jnp.where(valid[:, tt:tt + 1], h,
                                          0.0).astype(out_ref.dtype)
            # Capture h exactly at each row's last valid step (module requires
            # 1 <= length <= S).  h itself is carried unconditionally, keeping the
            # select off the serial critical path.
            hfin = jnp.where(is_last[:, tt:tt + 1], h, hfin)
        h_scratch[...] = h
        hfin_ref[...] = hfin

    @pl.when(jnp.logical_not(active))
    def _():
        # Every row of this shard already finished: emit zero padding only.  The x DMA
        # for this block is elided by the index_map clamp in the wrapper.
        out_ref[...] = jnp.zeros_like(out_ref)


@functools.partial(jax.jit, static_argnames=("ts",))
def sequence_encoder_forward(sequence, sequence_length, w_ih, w_hh, b_ih, b_hh, *, ts=8):
    """Pallas implementation of SequenceEncoder.forward (zero initial hidden state).

    sequence        : [B, S, E] float
    sequence_length : [B]       int   (all > 0, as the module requires)
    w_ih [H, E], w_hh [H, H], b_ih/b_hh [H]
    returns (output [B, S, H], hidden_state [B, H])
    """
    # TODO(synk): optional caller-provided initial hidden_state is not plumbed through;
    #             only the module default (rnn.init_state -> zeros) is implemented.
    B, S, E = sequence.shape
    H = w_hh.shape[0]
    assert ts % 8 == 0, "time block must be a multiple of the sublane count"

    Hp = _round_up(H, 128)                    # lane-aligned hidden size
    Sp = _round_up(S, ts)                     # time padded to whole blocks
    BB = _choose_batch_block(B)               # batch rows per shard (MXU M dim)
    # Shrink the batch tile until the pipelined blocks fit comfortably in VMEM
    # (v7x: 64 MiB physical / 32 MiB default scoped -> keep under ~48 MiB).
    while BB > 8 and _vmem_bytes_estimate(BB, ts, E, Hp) > (48 << 20):
        BB = max(8, (BB // 2) // 8 * 8)
    Bp = _round_up(B, BB)
    n_shards = Bp // BB
    n_tblk = Sp // ts

    # ---- padding (inert: padded rows get length 0; padded H columns carry zero
    #      weights/bias; padded timesteps are masked).  Skipped when already aligned. ----
    x = sequence.astype(jnp.float32)
    if (Bp, Sp) != (B, S):
        x = jnp.zeros((Bp, Sp, E), jnp.float32).at[:B, :S, :].set(x)

    if Bp != B:
        len_flat = jnp.zeros((Bp,), jnp.int32).at[:B].set(
            sequence_length.astype(jnp.int32))
    else:
        len_flat = sequence_length.astype(jnp.int32)
    len2d = len_flat.reshape(Bp, 1)

    wih_t = w_ih.T.astype(jnp.float32)
    whh_t = w_hh.T.astype(jnp.float32)
    bias = (b_ih + b_hh).astype(jnp.float32)
    if Hp != H:
        wih_t = jnp.zeros((E, Hp), jnp.float32).at[:, :H].set(wih_t)
        whh_t = jnp.zeros((Hp, Hp), jnp.float32).at[:H, :H].set(whh_t)
        bias = jnp.zeros((Hp,), jnp.float32).at[:H].set(bias)
    bias = bias.reshape(1, Hp)

    # Number of active time blocks per batch shard (scalar-prefetched into SMEM):
    # the kernel skips finished blocks and the x index_map elides their DMA.
    nt = (jnp.max(len_flat.reshape(n_shards, BB), axis=1) + ts - 1) // ts
    nt = jnp.clip(nt, 1, n_tblk).astype(jnp.int32)

    vmem_limit = int(min(max(_vmem_bytes_estimate(BB, ts, E, Hp), 32 << 20), 64 << 20))

    out_pad, h_fin = pl.pallas_call(
        functools.partial(_rnn_block_kernel, ts=ts),
        out_shape=(
            jax.ShapeDtypeStruct((Bp, Sp, Hp), jnp.float32),
            jax.ShapeDtypeStruct((Bp, Hp), jnp.float32),
        ),
        grid_spec=pltpu.PrefetchScalarGridSpec(
            num_scalar_prefetch=1,            # nt -> SMEM, seen by index_maps + kernel
            grid=(n_shards, n_tblk),
            in_specs=[
                pl.BlockSpec((BB, 1), lambda b, t, nt_ref: (b, 0)),        # lengths
                # Finished blocks clamp to the last active one -> same block index as
                # the previous step -> Pallas skips the DMA (kernel never reads it there).
                pl.BlockSpec((BB, ts, E),
                             lambda b, t, nt_ref: (b, jnp.minimum(t, nt_ref[b] - 1), 0)),
                pl.BlockSpec((E, Hp), lambda b, t, nt_ref: (0, 0)),        # W_ih^T (resident)
                pl.BlockSpec((1, Hp), lambda b, t, nt_ref: (0, 0)),        # bias   (resident)
                pl.BlockSpec((Hp, Hp), lambda b, t, nt_ref: (0, 0)),       # W_hh^T (resident)
            ],
            out_specs=[
                pl.BlockSpec((BB, ts, Hp), lambda b, t, nt_ref: (b, t, 0)),  # padded outputs
                pl.BlockSpec((BB, Hp), lambda b, t, nt_ref: (b, 0)),         # final hidden
            ],
            scratch_shapes=[pltpu.VMEM((BB, Hp), jnp.float32)],
        ),
        compiler_params=pltpu.CompilerParams(
            # Batch shards are independent (megacore-parallel on v7x);
            # the time axis carries the recurrence -> sequential.
            dimension_semantics=("parallel", "arbitrary"),
            vmem_limit_bytes=vmem_limit,
        ),
    )(nt, len2d, x, wih_t, bias, whh_t)

    output = out_pad if (Bp, Sp, Hp) == (B, S, H) else out_pad[:B, :S, :H]
    hidden = h_fin if (Bp, Hp) == (B, H) else h_fin[:B, :H]
    return output, hidden


def _reference(sequence, sequence_length, w_ih, w_hh, b_ih, b_hh):
    """Pure-JAX reference of the masked RNN (== sort/pack/pad/unsort semantics).

    Uses default matmul precision so numerics match the kernel's MXU path.
    """
    B, S, _ = sequence.shape
    H = w_hh.shape[0]
    h = jnp.zeros((B, H), jnp.float32)
    outs = []
    for t in range(S):
        x_t = sequence[:, t, :].astype(jnp.float32)
        h_new = jnp.tanh(x_t @ w_ih.T + b_ih + h @ w_hh.T + b_hh)
        valid = (sequence_length > t)[:, None]
        outs.append(jnp.where(valid, h_new, 0.0))
        h = jnp.where(valid, h_new, h)
    return jnp.stack(outs, axis=1), h


def _run_case(key, B, S, E, H, lengths, ts=8):
    ks = jax.random.split(key, 5)
    sequence = jax.random.normal(ks[0], (B, S, E), jnp.float32)
    sequence_length = jnp.asarray(lengths, jnp.int32)

    scale = 1.0 / jnp.sqrt(jnp.float32(H))
    w_ih = jax.random.uniform(ks[1], (H, E), jnp.float32, -scale, scale)
    w_hh = jax.random.uniform(ks[2], (H, H), jnp.float32, -scale, scale)
    b_ih = jax.random.uniform(ks[3], (H,), jnp.float32, -scale, scale)
    b_hh = jax.random.uniform(ks[4], (H,), jnp.float32, -scale, scale)

    output, hidden = sequence_encoder_forward(
        sequence, sequence_length, w_ih, w_hh, b_ih, b_hh, ts=ts)
    jax.block_until_ready((output, hidden))

    ref_out, ref_h = _reference(sequence, sequence_length, w_ih, w_hh, b_ih, b_hh)
    assert output.shape == (B, S, H) and hidden.shape == (B, H)
    assert jnp.allclose(output, ref_out, atol=2e-3, rtol=2e-3), "output mismatch"
    assert jnp.allclose(hidden, ref_h, atol=2e-3, rtol=2e-3), "hidden state mismatch"


if __name__ == "__main__":
    key = jax.random.PRNGKey(0)
    k1, k2 = jax.random.split(key, 2)

    # Base case (matches the module's documented small shapes).
    _run_case(k1, B=2, S=12, E=32, H=32, lengths=[12, 7])
    # Ragged multi-shard case: non-aligned E/H, padded batch rows, and one shard whose
    # trailing time block is fully skipped (exercises the inactive branch + DMA clamp).
    _run_case(k2, B=10, S=20, E=24, H=48,
              lengths=[20, 1, 7, 13, 5, 19, 2, 8, 16, 3])

    print("KERNEL_OK")
</pallas_src>

<mosaic_0001>
module attributes {stable_mosaic.version = 11 : i64} {
  func.func @_rnn_block_kernel(%arg0: i32, %arg1: i32, %arg2: memref<1xi32, #tpu.memory_space<smem>>, %arg3: memref<8x1xi32, #tpu.memory_space<vmem>>, %arg4: memref<8x8x32xf32, #tpu.memory_space<vmem>>, %arg5: memref<32x128xf32, #tpu.memory_space<vmem>>, %arg6: memref<1x128xf32, #tpu.memory_space<vmem>>, %arg7: memref<128x128xf32, #tpu.memory_space<vmem>>, %arg8: memref<8x8x128xf32, #tpu.memory_space<vmem>>, %arg9: memref<8x128xf32, #tpu.memory_space<vmem>>, %arg10: memref<8x128xf32, #tpu.memory_space<vmem>>) attributes {dimension_semantics = [#tpu.dimension_semantics<parallel>, #tpu.dimension_semantics<arbitrary>], iteration_bounds = array<i64: 1, 2>, scalar_prefetch = 1 : i64, scratch_operands = 1 : i64, tpu.core_type = #tpu.core_type<tc>, window_params = [{transform_indices = @transform_0, window_bounds = array<i64: 8, 1>}, {transform_indices = @transform_1, window_bounds = array<i64: 8, 8, 32>}, {pipeline_mode = #tpu.pipeline_mode<synchronous>, transform_indices = @transform_2, window_bounds = array<i64: 32, 128>}, {pipeline_mode = #tpu.pipeline_mode<synchronous>, transform_indices = @transform_3, window_bounds = array<i64: 1, 128>}, {pipeline_mode = #tpu.pipeline_mode<synchronous>, transform_indices = @transform_4, window_bounds = array<i64: 128, 128>}, {transform_indices = @transform_5, window_bounds = array<i64: 8, 8, 128>}, {transform_indices = @transform_6, window_bounds = array<i64: 8, 128>}]} {
    %c0_i32 = arith.constant 0 : i32
    %0 = arith.cmpi eq, %arg1, %c0_i32 : i32
    %1 = arith.extui %0 : i1 to i32
    %c0_i32_0 = arith.constant 0 : i32
    %2 = arith.cmpi ne, %1, %c0_i32_0 : i32
    scf.if %2 {
      %cst = arith.constant 0.000000e+00 : f32
      %11 = vector.broadcast %cst : f32 to vector<8x128xf32>
      %c0 = arith.constant 0 : index
      %c0_3 = arith.constant 0 : index
      %12 = vector.load %arg10[%c0, %c0_3] : memref<8x128xf32, #tpu.memory_space<vmem>>, vector<8x128xf32>
      tpu.vector_store %arg10[%c0, %c0_3], %11 {strides = array<i32>} : memref<8x128xf32, #tpu.memory_space<vmem>>, vector<8x128xf32>,
      %cst_4 = arith.constant 0.000000e+00 : f32
      %13 = vector.broadcast %cst_4 : f32 to vector<8x128xf32>
      %c0_5 = arith.constant 0 : index
      %c0_6 = arith.constant 0 : index
      %14 = vector.load %arg9[%c0_5, %c0_6] : memref<8x128xf32, #tpu.memory_space<vmem>>, vector<8x128xf32>
      tpu.vector_store %arg9[%c0_5, %c0_6], %13 {strides = array<i32>} : memref<8x128xf32, #tpu.memory_space<vmem>>, vector<8x128xf32>,
    } else {
    }
    %3 = arith.index_cast %arg0 : i32 to index
    %4 = memref.load %arg2[%3] : memref<1xi32, #tpu.memory_space<smem>>
    %5 = arith.cmpi slt, %arg1, %4 : i32
    %6 = arith.extui %5 : i1 to i32
    %c0_i32_1 = arith.constant 0 : i32
    %7 = arith.cmpi ne, %6, %c0_i32_1 : i32
    scf.if %7 {
      %c0 = arith.constant 0 : index
      %c0_3 = arith.constant 0 : index
      %11 = vector.load %arg3[%c0, %c0_3] : memref<8x1xi32, #tpu.memory_space<vmem>>, vector<8x1xi32>
      %c8_i32 = arith.constant 8 : i32
      %12 = arith.muli %arg1, %c8_i32 : i32
      %13 = tpu.iota {dimensions = array<i32: 1>} : vector<1x8xi32>
      %14 = vector.broadcast %12 : i32 to vector<1x8xi32>
      %15 = arith.addi %14, %13 : vector<1x8xi32>
      %16 = vector.broadcast %11 : vector<8x1xi32> to vector<8x8xi32>
      %17 = vector.broadcast %15 : vector<1x8xi32> to vector<8x8xi32>
      %18 = arith.cmpi sgt, %16, %17 : vector<8x8xi32>
      %c1_i32 = arith.constant 1 : i32
      %19 = vector.broadcast %c1_i32 : i32 to vector<1x8xi32>
      %20 = arith.addi %15, %19 : vector<1x8xi32>
      %21 = vector.broadcast %11 : vector<8x1xi32> to vector<8x8xi32>
      %22 = vector.broadcast %20 : vector<1x8xi32> to vector<8x8xi32>
      %23 = arith.cmpi eq, %21, %22 : vector<8x8xi32>
      %c0_4 = arith.constant 0 : index
      %c0_5 = arith.constant 0 : index
      %24 = vector.load %arg5[%c0_4, %c0_5] : memref<32x128xf32, #tpu.memory_space<vmem>>, vector<32x128xf32>
      %c0_6 = arith.constant 0 : index
      %c0_7 = arith.constant 0 : index
      %25 = vector.load %arg7[%c0_6, %c0_7] : memref<128x128xf32, #tpu.memory_space<vmem>>, vector<128x128xf32>
      %c0_8 = arith.constant 0 : index
      %c0_9 = arith.constant 0 : index
      %26 = vector.load %arg6[%c0_8, %c0_9] : memref<1x128xf32, #tpu.memory_space<vmem>>, vector<1x128xf32>
      %c0_10 = arith.constant 0 : index
      %c0_11 = arith.constant 0 : index
      %27 = vector.load %arg10[%c0_10, %c0_11] : memref<8x128xf32, #tpu.memory_space<vmem>>, vector<8x128xf32>
      %c0_12 = arith.constant 0 : index
      %c0_13 = arith.constant 0 : index
      %28 = vector.load %arg9[%c0_12, %c0_13] : memref<8x128xf32, #tpu.memory_space<vmem>>, vector<8x128xf32>
      %c0_14 = arith.constant 0 : index
      %c0_15 = arith.constant 0 : index
      %c0_16 = arith.constant 0 : index
      %29 = vector.load %arg4[%c0_14, %c0_15, %c0_16] : memref<8x8x32xf32, #tpu.memory_space<vmem>>, vector<8x1x32xf32>
      %30 = vector.shape_cast %29 : vector<8x1x32xf32> to vector<8x32xf32>
      %cst = arith.constant dense<0.000000e+00> : vector<8x128xf32>
      %31 = tpu.matmul %30, %24, %cst {dimension_numbers = #tpu.dot_dimension_numbers<[1], [0], [0], [1], [0, 0, 1, 1], [], []>} : vector<8x32xf32>, vector<32x128xf32>, vector<8x128xf32> -> vector<8x128xf32>
      %32 = vector.broadcast %26 : vector<1x128xf32> to vector<8x128xf32>
      %33 = arith.addf %31, %32 : vector<8x128xf32>
      %cst_17 = arith.constant dense<0.000000e+00> : vector<8x128xf32>
      %34 = tpu.matmul %27, %25, %cst_17 {dimension_numbers = #tpu.dot_dimension_numbers<[1], [0], [0], [1], [0, 0, 1, 1], [], []>} : vector<8x128xf32>, vector<128x128xf32>, vector<8x128xf32> -> vector<8x128xf32>
      %35 = arith.addf %33, %34 : vector<8x128xf32>
      %36 = math.tanh %35 : vector<8x128xf32>
      %37 = vector.extract_strided_slice %18 {offsets = [0, 0], sizes = [8, 1], strides = [1, 1]} : vector<8x8xi1> to vector<8x1xi1>
      %cst_18 = arith.constant 0.000000e+00 : f32
      %38 = vector.shape_cast %37 : vector<8x1xi1> to vector<8x1xi1>
      %39 = vector.broadcast %38 : vector<8x1xi1> to vector<8x128xi1>
      %40 = vector.broadcast %cst_18 : f32 to vector<8x128xf32>
      %41 = arith.select %39, %36, %40 : vector<8x128xi1>, vector<8x128xf32>
      %c0_19 = arith.constant 0 : index
      %c0_20 = arith.constant 0 : index
      %c0_21 = arith.constant 0 : index
      %42 = vector.load %arg8[%c0_19, %c0_20, %c0_21] : memref<8x8x128xf32, #tpu.memory_space<vmem>>, vector<8x1x128xf32>
      %43 = vector.shape_cast %42 : vector<8x1x128xf32> to vector<8x128xf32>
      %44 = vector.shape_cast %41 : vector<8x128xf32> to vector<8x1x128xf32>
      tpu.vector_store %arg8[%c0_19, %c0_20, %c0_21], %44 {strides = array<i32>} : memref<8x8x128xf32, #tpu.memory_space<vmem>>, vector<8x1x128xf32>,
      %45 = vector.extract_strided_slice %23 {offsets = [0, 0], sizes = [8, 1], strides = [1, 1]} : vector<8x8xi1> to vector<8x1xi1>
      %46 = vector.shape_cast %45 : vector<8x1xi1> to vector<8x1xi1>
      %47 = vector.broadcast %46 : vector<8x1xi1> to vector<8x128xi1>
      %48 = arith.select %47, %36, %28 : vector<8x128xi1>, vector<8x128xf32>
      %c0_22 = arith.constant 0 : index
      %c1 = arith.constant 1 : index
      %c0_23 = arith.constant 0 : index
      %49 = vector.load %arg4[%c0_22, %c1, %c0_23] : memref<8x8x32xf32, #tpu.memory_space<vmem>>, vector<8x1x32xf32>
      %50 = vector.shape_cast %49 : vector<8x1x32xf32> to vector<8x32xf32>
      %cst_24 = arith.constant dense<0.000000e+00> : vector<8x128xf32>
      %51 = tpu.matmul %50, %24, %cst_24 {dimension_numbers = #tpu.dot_dimension_numbers<[1], [0], [0], [1], [0, 0, 1, 1], [], []>} : vector<8x32xf32>, vector<32x128xf32>, vector<8x128xf32> -> vector<8x128xf32>
      %52 = vector.broadcast %26 : vector<1x128xf32> to vector<8x128xf32>
      %53 = arith.addf %51, %52 : vector<8x128xf32>
      %cst_25 = arith.constant dense<0.000000e+00> : vector<8x128xf32>
      %54 = tpu.matmul %36, %25, %cst_25 {dimension_numbers = #tpu.dot_dimension_numbers<[1], [0], [0], [1], [0, 0, 1, 1], [], []>} : vector<8x128xf32>, vector<128x128xf32>, vector<8x128xf32> -> vector<8x128xf32>
      %55 = arith.addf %53, %54 : vector<8x128xf32>
      %56 = math.tanh %55 : vector<8x128xf32>
      %57 = vector.extract_strided_slice %18 {offsets = [0, 1], sizes = [8, 1], strides = [1, 1]} : vector<8x8xi1> to vector<8x1xi1>
      %cst_26 = arith.constant 0.000000e+00 : f32
      %58 = vector.shape_cast %57 : vector<8x1xi1> to vector<8x1xi1>
      %59 = vector.broadcast %58 : vector<8x1xi1> to vector<8x128xi1>
      %60 = vector.broadcast %cst_26 : f32 to vector<8x128xf32>
      %61 = arith.select %59, %56, %60 : vector<8x128xi1>, vector<8x128xf32>
      %c0_27 = arith.constant 0 : index
      %c1_28 = arith.constant 1 : index
      %c0_29 = arith.constant 0 : index
      %62 = vector.load %arg8[%c0_27, %c1_28, %c0_29] : memref<8x8x128xf32, #tpu.memory_space<vmem>>, vector<8x1x128xf32>
      %63 = vector.shape_cast %62 : vector<8x1x128xf32> to vector<8x128xf32>
      %64 = vector.shape_cast %61 : vector<8x128xf32> to vector<8x1x128xf32>
      tpu.vector_store %arg8[%c0_27, %c1_28, %c0_29], %64 {strides = array<i32>} : memref<8x8x128xf32, #tpu.memory_space<vmem>>, vector<8x1x128xf32>,
      %65 = vector.extract_strided_slice %23 {offsets = [0, 1], sizes = [8, 1], strides = [1, 1]} : vector<8x8xi1> to vector<8x1xi1>
      %66 = vector.shape_cast %65 : vector<8x1xi1> to vector<8x1xi1>
      %67 = vector.broadcast %66 : vector<8x1xi1> to vector<8x128xi1>
      %68 = arith.select %67, %56, %48 : vector<8x128xi1>, vector<8x128xf32>
      %c0_30 = arith.constant 0 : index
      %c2 = arith.constant 2 : index
      %c0_31 = arith.constant 0 : index
      %69 = vector.load %arg4[%c0_30, %c2, %c0_31] : memref<8x8x32xf32, #tpu.memory_space<vmem>>, vector<8x1x32xf32>
      %70 = vector.shape_cast %69 : vector<8x1x32xf32> to vector<8x32xf32>
      %cst_32 = arith.constant dense<0.000000e+00> : vector<8x128xf32>
      %71 = tpu.matmul %70, %24, %cst_32 {dimension_numbers = #tpu.dot_dimension_numbers<[1], [0], [0], [1], [0, 0, 1, 1], [], []>} : vector<8x32xf32>, vector<32x128xf32>, vector<8x128xf32> -> vector<8x128xf32>
      %72 = vector.broadcast %26 : vector<1x128xf32> to vector<8x128xf32>
      %73 = arith.addf %71, %72 : vector<8x128xf32>
      %cst_33 = arith.constant dense<0.000000e+00> : vector<8x128xf32>
      %74 = tpu.matmul %56, %25, %cst_33 {dimension_numbers = #tpu.dot_dimension_numbers<[1], [0], [0], [1], [0, 0, 1, 1], [], []>} : vector<8x128xf32>, vector<128x128xf32>, vector<8x128xf32> -> vector<8x128xf32>
      %75 = arith.addf %73, %74 : vector<8x128xf32>
      %76 = math.tanh %75 : vector<8x128xf32>
      %77 = vector.extract_strided_slice %18 {offsets = [0, 2], sizes = [8, 1], strides = [1, 1]} : vector<8x8xi1> to vector<8x1xi1>
      %cst_34 = arith.constant 0.000000e+00 : f32
      %78 = vector.shape_cast %77 : vector<8x1xi1> to vector<8x1xi1>
      %79 = vector.broadcast %78 : vector<8x1xi1> to vector<8x128xi1>
      %80 = vector.broadcast %cst_34 : f32 to vector<8x128xf32>
      %81 = arith.select %79, %76, %80 : vector<8x128xi1>, vector<8x128xf32>
      %c0_35 = arith.constant 0 : index
      %c2_36 = arith.constant 2 : index
      %c0_37 = arith.constant 0 : index
      %82 = vector.load %arg8[%c0_35, %c2_36, %c0_37] : memref<8x8x128xf32, #tpu.memory_space<vmem>>, vector<8x1x128xf32>
      %83 = vector.shape_cast %82 : vector<8x1x128xf32> to vector<8x128xf32>
      %84 = vector.shape_cast %81 : vector<8x128xf32> to vector<8x1x128xf32>
      tpu.vector_store %arg8[%c0_35, %c2_36, %c0_37], %84 {strides = array<i32>} : memref<8x8x128xf32, #tpu.memory_space<vmem>>, vector<8x1x128xf32>,
      %85 = vector.extract_strided_slice %23 {offsets = [0, 2], sizes = [8, 1], strides = [1, 1]} : vector<8x8xi1> to vector<8x1xi1>
      %86 = vector.shape_cast %85 : vector<8x1xi1> to vector<8x1xi1>
      %87 = vector.broadcast %86 : vector<8x1xi1> to vector<8x128xi1>
      %88 = arith.select %87, %76, %68 : vector<8x128xi1>, vector<8x128xf32>
      %c0_38 = arith.constant 0 : index
      %c3 = arith.constant 3 : index
      %c0_39 = arith.constant 0 : index
      %89 = vector.load %arg4[%c0_38, %c3, %c0_39] : memref<8x8x32xf32, #tpu.memory_space<vmem>>, vector<8x1x32xf32>
      %90 = vector.shape_cast %89 : vector<8x1x32xf32> to vector<8x32xf32>
      %cst_40 = arith.constant dense<0.000000e+00> : vector<8x128xf32>
      %91 = tpu.matmul %90, %24, %cst_40 {dimension_numbers = #tpu.dot_dimension_numbers<[1], [0], [0], [1], [0, 0, 1, 1], [], []>} : vector<8x32xf32>, vector<32x128xf32>, vector<8x128xf32> -> vector<8x128xf32>
      %92 = vector.broadcast %26 : vector<1x128xf32> to vector<8x128xf32>
      %93 = arith.addf %91, %92 : vector<8x128xf32>
      %cst_41 = arith.constant dense<0.000000e+00> : vector<8x128xf32>
      %94 = tpu.matmul %76, %25, %cst_41 {dimension_numbers = #tpu.dot_dimension_numbers<[1], [0], [0], [1], [0, 0, 1, 1], [], []>} : vector<8x128xf32>, vector<128x128xf32>, vector<8x128xf32> -> vector<8x128xf32>
      %95 = arith.addf %93, %94 : vector<8x128xf32>
      %96 = math.tanh %95 : vector<8x128xf32>
      %97 = vector.extract_strided_slice %18 {offsets = [0, 3], sizes = [8, 1], strides = [1, 1]} : vector<8x8xi1> to vector<8x1xi1>
      %cst_42 = arith.constant 0.000000e+00 : f32
      %98 = vector.shape_cast %97 : vector<8x1xi1> to vector<8x1xi1>
      %99 = vector.broadcast %98 : vector<8x1xi1> to vector<8x128xi1>
      %100 = vector.broadcast %cst_42 : f32 to vector<8x128xf32>
      %101 = arith.select %99, %96, %100 : vector<8x128xi1>, vector<8x128xf32>
      %c0_43 = arith.constant 0 : index
      %c3_44 = arith.constant 3 : index
      %c0_45 = arith.constant 0 : index
      %102 = vector.load %arg8[%c0_43, %c3_44, %c0_45] : memref<8x8x128xf32, #tpu.memory_space<vmem>>, vector<8x1x128xf32>
      %103 = vector.shape_cast %102 : vector<8x1x128xf32> to vector<8x128xf32>
      %104 = vector.shape_cast %101 : vector<8x128xf32> to vector<8x1x128xf32>
      tpu.vector_store %arg8[%c0_43, %c3_44, %c0_45], %104 {strides = array<i32>} : memref<8x8x128xf32, #tpu.memory_space<vmem>>, vector<8x1x128xf32>,
      %105 = vector.extract_strided_slice %23 {offsets = [0, 3], sizes = [8, 1], strides = [1, 1]} : vector<8x8xi1> to vector<8x1xi1>
      %106 = vector.shape_cast %105 : vector<8x1xi1> to vector<8x1xi1>
      %107 = vector.broadcast %106 : vector<8x1xi1> to vector<8x128xi1>
      %108 = arith.select %107, %96, %88 : vector<8x128xi1>, vector<8x128xf32>
      %c0_46 = arith.constant 0 : index
      %c4 = arith.constant 4 : index
      %c0_47 = arith.constant 0 : index
      %109 = vector.load %arg4[%c0_46, %c4, %c0_47] : memref<8x8x32xf32, #tpu.memory_space<vmem>>, vector<8x1x32xf32>
      %110 = vector.shape_cast %109 : vector<8x1x32xf32> to vector<8x32xf32>
      %cst_48 = arith.constant dense<0.000000e+00> : vector<8x128xf32>
      %111 = tpu.matmul %110, %24, %cst_48 {dimension_numbers = #tpu.dot_dimension_numbers<[1], [0], [0], [1], [0, 0, 1, 1], [], []>} : vector<8x32xf32>, vector<32x128xf32>, vector<8x128xf32> -> vector<8x128xf32>
      %112 = vector.broadcast %26 : vector<1x128xf32> to vector<8x128xf32>
      %113 = arith.addf %111, %112 : vector<8x128xf32>
      %cst_49 = arith.constant dense<0.000000e+00> : vector<8x128xf32>
      %114 = tpu.matmul %96, %25, %cst_49 {dimension_numbers = #tpu.dot_dimension_numbers<[1], [0], [0], [1], [0, 0, 1, 1], [], []>} : vector<8x128xf32>, vector<128x128xf32>, vector<8x128xf32> -> vector<8x128xf32>
      %115 = arith.addf %113, %114 : vector<8x128xf32>
      %116 = math.tanh %115 : vector<8x128xf32>
      %117 = vector.extract_strided_slice %18 {offsets = [0, 4], sizes = [8, 1], strides = [1, 1]} : vector<8x8xi1> to vector<8x1xi1>
      %cst_50 = arith.constant 0.000000e+00 : f32
      %118 = vector.shape_cast %117 : vector<8x1xi1> to vector<8x1xi1>
      %119 = vector.broadcast %118 : vector<8x1xi1> to vector<8x128xi1>
      %120 = vector.broadcast %cst_50 : f32 to vector<8x128xf32>
      %121 = arith.select %119, %116, %120 : vector<8x128xi1>, vector<8x128xf32>
      %c0_51 = arith.constant 0 : index
      %c4_52 = arith.constant 4 : index
      %c0_53 = arith.constant 0 : index
      %122 = vector.load %arg8[%c0_51, %c4_52, %c0_53] : memref<8x8x128xf32, #tpu.memory_space<vmem>>, vector<8x1x128xf32>
      %123 = vector.shape_cast %122 : vector<8x1x128xf32> to vector<8x128xf32>
      %124 = vector.shape_cast %121 : vector<8x128xf32> to vector<8x1x128xf32>
      tpu.vector_store %arg8[%c0_51, %c4_52, %c0_53], %124 {strides = array<i32>} : memref<8x8x128xf32, #tpu.memory_space<vmem>>, vector<8x1x128xf32>,
      %125 = vector.extract_strided_slice %23 {offsets = [0, 4], sizes = [8, 1], strides = [1, 1]} : vector<8x8xi1> to vector<8x1xi1>
      %126 = vector.shape_cast %125 : vector<8x1xi1> to vector<8x1xi1>
      %127 = vector.broadcast %126 : vector<8x1xi1> to vector<8x128xi1>
      %128 = arith.select %127, %116, %108 : vector<8x128xi1>, vector<8x128xf32>
      %c0_54 = arith.constant 0 : index
      %c5 = arith.constant 5 : index
      %c0_55 = arith.constant 0 : index
      %129 = vector.load %arg4[%c0_54, %c5, %c0_55] : memref<8x8x32xf32, #tpu.memory_space<vmem>>, vector<8x1x32xf32>
      %130 = vector.shape_cast %129 : vector<8x1x32xf32> to vector<8x32xf32>
      %cst_56 = arith.constant dense<0.000000e+00> : vector<8x128xf32>
      %131 = tpu.matmul %130, %24, %cst_56 {dimension_numbers = #tpu.dot_dimension_numbers<[1], [0], [0], [1], [0, 0, 1, 1], [], []>} : vector<8x32xf32>, vector<32x128xf32>, vector<8x128xf32> -> vector<8x128xf32>
      %132 = vector.broadcast %26 : vector<1x128xf32> to vector<8x128xf32>
      %133 = arith.addf %131, %132 : vector<8x128xf32>
      %cst_57 = arith.constant dense<0.000000e+00> : vector<8x128xf32>
      %134 = tpu.matmul %116, %25, %cst_57 {dimension_numbers = #tpu.dot_dimension_numbers<[1], [0], [0], [1], [0, 0, 1, 1], [], []>} : vector<8x128xf32>, vector<128x128xf32>, vector<8x128xf32> -> vector<8x128xf32>
      %135 = arith.addf %133, %134 : vector<8x128xf32>
      %136 = math.tanh %135 : vector<8x128xf32>
      %137 = vector.extract_strided_slice %18 {offsets = [0, 5], sizes = [8, 1], strides = [1, 1]} : vector<8x8xi1> to vector<8x1xi1>
      %cst_58 = arith.constant 0.000000e+00 : f32
      %138 = vector.shape_cast %137 : vector<8x1xi1> to vector<8x1xi1>
      %139 = vector.broadcast %138 : vector<8x1xi1> to vector<8x128xi1>
      %140 = vector.broadcast %cst_58 : f32 to vector<8x128xf32>
      %141 = arith.select %139, %136, %140 : vector<8x128xi1>, vector<8x128xf32>
      %c0_59 = arith.constant 0 : index
      %c5_60 = arith.constant 5 : index
      %c0_61 = arith.constant 0 : index
      %142 = vector.load %arg8[%c0_59, %c5_60, %c0_61] : memref<8x8x128xf32, #tpu.memory_space<vmem>>, vector<8x1x128xf32>
      %143 = vector.shape_cast %142 : vector<8x1x128xf32> to vector<8x128xf32>
      %144 = vector.shape_cast %141 : vector<8x128xf32> to vector<8x1x128xf32>
      tpu.vector_store %arg8[%c0_59, %c5_60, %c0_61], %144 {strides = array<i32>} : memref<8x8x128xf32, #tpu.memory_space<vmem>>, vector<8x1x128xf32>,
      %145 = vector.extract_strided_slice %23 {offsets = [0, 5], sizes = [8, 1], strides = [1, 1]} : vector<8x8xi1> to vector<8x1xi1>
      %146 = vector.shape_cast %145 : vector<8x1xi1> to vector<8x1xi1>
      %147 = vector.broadcast %146 : vector<8x1xi1> to vector<8x128xi1>
      %148 = arith.select %147, %136, %128 : vector<8x128xi1>, vector<8x128xf32>
      %c0_62 = arith.constant 0 : index
      %c6 = arith.constant 6 : index
      %c0_63 = arith.constant 0 : index
      %149 = vector.load %arg4[%c0_62, %c6, %c0_63] : memref<8x8x32xf32, #tpu.memory_space<vmem>>, vector<8x1x32xf32>
      %150 = vector.shape_cast %149 : vector<8x1x32xf32> to vector<8x32xf32>
      %cst_64 = arith.constant dense<0.000000e+00> : vector<8x128xf32>
      %151 = tpu.matmul %150, %24, %cst_64 {dimension_numbers = #tpu.dot_dimension_numbers<[1], [0], [0], [1], [0, 0, 1, 1], [], []>} : vector<8x32xf32>, vector<32x128xf32>, vector<8x128xf32> -> vector<8x128xf32>
      %152 = vector.broadcast %26 : vector<1x128xf32> to vector<8x128xf32>
      %153 = arith.addf %151, %152 : vector<8x128xf32>
      %cst_65 = arith.constant dense<0.000000e+00> : vector<8x128xf32>
      %154 = tpu.matmul %136, %25, %cst_65 {dimension_numbers = #tpu.dot_dimension_numbers<[1], [0], [0], [1], [0, 0, 1, 1], [], []>} : vector<8x128xf32>, vector<128x128xf32>, vector<8x128xf32> -> vector<8x128xf32>
      %155 = arith.addf %153, %154 : vector<8x128xf32>
      %156 = math.tanh %155 : vector<8x128xf32>
      %157 = vector.extract_strided_slice %18 {offsets = [0, 6], sizes = [8, 1], strides = [1, 1]} : vector<8x8xi1> to vector<8x1xi1>
      %cst_66 = arith.constant 0.000000e+00 : f32
      %158 = vector.shape_cast %157 : vector<8x1xi1> to vector<8x1xi1>
      %159 = vector.broadcast %158 : vector<8x1xi1> to vector<8x128xi1>
      %160 = vector.broadcast %cst_66 : f32 to vector<8x128xf32>
      %161 = arith.select %159, %156, %160 : vector<8x128xi1>, vector<8x128xf32>
      %c0_67 = arith.constant 0 : index
      %c6_68 = arith.constant 6 : index
      %c0_69 = arith.constant 0 : index
      %162 = vector.load %arg8[%c0_67, %c6_68, %c0_69] : memref<8x8x128xf32, #tpu.memory_space<vmem>>, vector<8x1x128xf32>
      %163 = vector.shape_cast %162 : vector<8x1x128xf32> to vector<8x128xf32>
      %164 = vector.shape_cast %161 : vector<8x128xf32> to vector<8x1x128xf32>
      tpu.vector_store %arg8[%c0_67, %c6_68, %c0_69], %164 {strides = array<i32>} : memref<8x8x128xf32, #tpu.memory_space<vmem>>, vector<8x1x128xf32>,
      %165 = vector.extract_strided_slice %23 {offsets = [0, 6], sizes = [8, 1], strides = [1, 1]} : vector<8x8xi1> to vector<8x1xi1>
      %166 = vector.shape_cast %165 : vector<8x1xi1> to vector<8x1xi1>
      %167 = vector.broadcast %166 : vector<8x1xi1> to vector<8x128xi1>
      %168 = arith.select %167, %156, %148 : vector<8x128xi1>, vector<8x128xf32>
      %c0_70 = arith.constant 0 : index
      %c7 = arith.constant 7 : index
      %c0_71 = arith.constant 0 : index
      %169 = vector.load %arg4[%c0_70, %c7, %c0_71] : memref<8x8x32xf32, #tpu.memory_space<vmem>>, vector<8x1x32xf32>
      %170 = vector.shape_cast %169 : vector<8x1x32xf32> to vector<8x32xf32>
      %cst_72 = arith.constant dense<0.000000e+00> : vector<8x128xf32>
      %171 = tpu.matmul %170, %24, %cst_72 {dimension_numbers = #tpu.dot_dimension_numbers<[1], [0], [0], [1], [0, 0, 1, 1], [], []>} : vector<8x32xf32>, vector<32x128xf32>, vector<8x128xf32> -> vector<8x128xf32>
      %172 = vector.broadcast %26 : vector<1x128xf32> to vector<8x128xf32>
      %173 = arith.addf %171, %172 : vector<8x128xf32>
      %cst_73 = arith.constant dense<0.000000e+00> : vector<8x128xf32>
      %174 = tpu.matmul %156, %25, %cst_73 {dimension_numbers = #tpu.dot_dimension_numbers<[1], [0], [0], [1], [0, 0, 1, 1], [], []>} : vector<8x128xf32>, vector<128x128xf32>, vector<8x128xf32> -> vector<8x128xf32>
      %175 = arith.addf %173, %174 : vector<8x128xf32>
      %176 = math.tanh %175 : vector<8x128xf32>
      %177 = vector.extract_strided_slice %18 {offsets = [0, 7], sizes = [8, 1], strides = [1, 1]} : vector<8x8xi1> to vector<8x1xi1>
      %cst_74 = arith.constant 0.000000e+00 : f32
      %178 = vector.shape_cast %177 : vector<8x1xi1> to vector<8x1xi1>
      %179 = vector.broadcast %178 : vector<8x1xi1> to vector<8x128xi1>
      %180 = vector.broadcast %cst_74 : f32 to vector<8x128xf32>
      %181 = arith.select %179, %176, %180 : vector<8x128xi1>, vector<8x128xf32>
      %c0_75 = arith.constant 0 : index
      %c7_76 = arith.constant 7 : index
      %c0_77 = arith.constant 0 : index
      %182 = vector.load %arg8[%c0_75, %c7_76, %c0_77] : memref<8x8x128xf32, #tpu.memory_space<vmem>>, vector<8x1x128xf32>
      %183 = vector.shape_cast %182 : vector<8x1x128xf32> to vector<8x128xf32>
      %184 = vector.shape_cast %181 : vector<8x128xf32> to vector<8x1x128xf32>
      tpu.vector_store %arg8[%c0_75, %c7_76, %c0_77], %184 {strides = array<i32>} : memref<8x8x128xf32, #tpu.memory_space<vmem>>, vector<8x1x128xf32>,
      %185 = vector.extract_strided_slice %23 {offsets = [0, 7], sizes = [8, 1], strides = [1, 1]} : vector<8x8xi1> to vector<8x1xi1>
      %186 = vector.shape_cast %185 : vector<8x1xi1> to vector<8x1xi1>
      %187 = vector.broadcast %186 : vector<8x1xi1> to vector<8x128xi1>
      %188 = arith.select %187, %176, %168 : vector<8x128xi1>, vector<8x128xf32>
      %c0_78 = arith.constant 0 : index
      %c0_79 = arith.constant 0 : index
      %189 = vector.load %arg10[%c0_78, %c0_79] : memref<8x128xf32, #tpu.memory_space<vmem>>, vector<8x128xf32>
      tpu.vector_store %arg10[%c0_78, %c0_79], %176 {strides = array<i32>} : memref<8x128xf32, #tpu.memory_space<vmem>>, vector<8x128xf32>,
      %c0_80 = arith.constant 0 : index
      %c0_81 = arith.constant 0 : index
      %190 = vector.load %arg9[%c0_80, %c0_81] : memref<8x128xf32, #tpu.memory_space<vmem>>, vector<8x128xf32>
      tpu.vector_store %arg9[%c0_80, %c0_81], %188 {strides = array<i32>} : memref<8x128xf32, #tpu.memory_space<vmem>>, vector<8x128xf32>,
    } else {
    }
    %true = arith.constant true
    %8 = arith.xori %5, %true : i1
    %9 = arith.extui %8 : i1 to i32
    %c0_i32_2 = arith.constant 0 : i32
    %10 = arith.cmpi ne, %9, %c0_i32_2 : i32
    scf.if %10 {
      %cst = arith.constant 0.000000e+00 : f32
      %11 = vector.broadcast %cst : f32 to vector<8x8x128xf32>
      %c0 = arith.constant 0 : index
      %c0_3 = arith.constant 0 : index
      %c0_4 = arith.constant 0 : index
      %12 = vector.load %arg8[%c0, %c0_3, %c0_4] : memref<8x8x128xf32, #tpu.memory_space<vmem>>, vector<8x8x128xf32>
      tpu.vector_store %arg8[%c0, %c0_3, %c0_4], %11 {strides = array<i32>} : memref<8x8x128xf32, #tpu.memory_space<vmem>>, vector<8x8x128xf32>,
    } else {
    }
    return
  }
  func.func @transform_0(%arg0: i32, %arg1: i32, %arg2: memref<1xi32, #tpu.memory_space<smem>>) -> (i32, i32) {
    %c0_i32 = arith.constant 0 : i32
    %c0_i32_0 = arith.constant 0 : i32
    return %arg0, %c0_i32 : i32, i32
  }
  func.func @transform_1(%arg0: i32, %arg1: i32, %arg2: memref<1xi32, #tpu.memory_space<smem>>) -> (i32, i32, i32) {
    %0 = arith.index_cast %arg0 : i32 to index
    %1 = memref.load %arg2[%0] : memref<1xi32, #tpu.memory_space<smem>>
    %c1_i32 = arith.constant 1 : i32
    %2 = arith.subi %1, %c1_i32 : i32
    %3 = arith.minsi %arg1, %2 : i32
    %c0_i32 = arith.constant 0 : i32
    %c0_i32_0 = arith.constant 0 : i32
    return %arg0, %3, %c0_i32 : i32, i32, i32
  }
  func.func @transform_2(%arg0: i32, %arg1: i32, %arg2: memref<1xi32, #tpu.memory_space<smem>>) -> (i32, i32) {
    %c0_i32 = arith.constant 0 : i32
    %c0_i32_0 = arith.constant 0 : i32
    %c0_i32_1 = arith.constant 0 : i32
    return %c0_i32, %c0_i32_0 : i32, i32
  }
  func.func @transform_3(%arg0: i32, %arg1: i32, %arg2: memref<1xi32, #tpu.memory_space<smem>>) -> (i32, i32) {
    %c0_i32 = arith.constant 0 : i32
    %c0_i32_0 = arith.constant 0 : i32
    %c0_i32_1 = arith.constant 0 : i32
    return %c0_i32, %c0_i32_0 : i32, i32
  }
  func.func @transform_4(%arg0: i32, %arg1: i32, %arg2: memref<1xi32, #tpu.memory_space<smem>>) -> (i32, i32) {
    %c0_i32 = arith.constant 0 : i32
    %c0_i32_0 = arith.constant 0 : i32
    %c0_i32_1 = arith.constant 0 : i32
    return %c0_i32, %c0_i32_0 : i32, i32
  }
  func.func @transform_5(%arg0: i32, %arg1: i32, %arg2: memref<1xi32, #tpu.memory_space<smem>>) -> (i32, i32, i32) {
    %c0_i32 = arith.constant 0 : i32
    %c0_i32_0 = arith.constant 0 : i32
    return %arg0, %arg1, %c0_i32 : i32, i32, i32
  }
  func.func @transform_6(%arg0: i32, %arg1: i32, %arg2: memref<1xi32, #tpu.memory_space<smem>>) -> (i32, i32) {
    %c0_i32 = arith.constant 0 : i32
    %c0_i32_0 = arith.constant 0 : i32
    return %arg0, %c0_i32 : i32, i32
  }
}

</mosaic_0001>

<llo_original>
// kernel: sequence_encoder_forward.1
$region0: #{sequence_encoder_forward.1}
  #allocation0 [shape = 'u32[]', space=smem, size = 0x4, offset = 0x4, fixed_abs, tag = 'smem constant byte address 0x4 - core index']
  #allocation1 [shape = 'u32[144,128]{1,0:T(1,128)}', space=vmem, size = 0x12000, scoped, tag = 'internal scratch']
  #allocation2 [shape = 'f32[8,128]{1,0:T(8,128)}', space=vmem, size = 0x1000, scoped, tag = 'scratch operand']
  #allocation3 [shape = 's32[1]{0}', space=sflag, size = 0x4, scoped, tag = 'scoped memory for sequence_encoder_forward.1']
  #allocation4 [shape = 's32[1]{0:T(128)S(6)}', space=smem, size = 0x200, scoped, tag = 'prefetched SMEM operand 0']
  %s0 = inlined_call_operand.<no memory space> [shape: s32[1], index: 0, kind: input, shape index: {}]
  %s1 = inlined_call_operand.vmem [shape: s32[8,1], index: 1, kind: input, shape index: {}]
  %s2 = inlined_call_operand.vmem [shape: f32[8,16,32], index: 2, kind: input, shape index: {}]
  %s3 = inlined_call_operand.vmem [shape: f32[32,128], index: 3, kind: input, shape index: {}]
  %s4 = inlined_call_operand.vmem [shape: f32[1,128], index: 4, kind: input, shape index: {}]
  %s5 = inlined_call_operand.vmem [shape: f32[128,128], index: 5, kind: input, shape index: {}]
  %s6 = inlined_call_operand.vmem [shape: f32[8,16,128], index: 6, kind: output, shape index: {0}]
  %s7 = inlined_call_operand.vmem [shape: f32[8,128], index: 7, kind: output, shape index: {1}]
  %8 = xla_tuple %s6, %s7
  %s9 = sld [smem:[#allocation0]]
  $region145: #{sequence_encoder_forward.1} parent=0
    _
  %s11 = ssub.s32 1, %s9
  %s12 = scalar_select 0, %s11, %s9
  %13 = sst [smem:[#allocation4]] %s0
  $region1: #{sequence_encoder_forward.1} parent=0
    #allocation5 [shape = 'u8[65536]{0}', space=vmem, size = 0x10000, scoped, tag = 'input window, operand 2']
    #allocation6 [shape = 'u8[65536]{0}', space=vmem, size = 0x10000, scoped, tag = 'output window, operand 0']
    loop: start=0, step=1, limit=4
    $region2: #{sequence_encoder_forward.1} parent=1 // loop_pre_header
      _
    $region3: #{sequence_encoder_forward.1} parent=1 // loop_header
      %s15 = sphi 0, %s19
      %p16 = scmp.ge.s32.totalorder %s15, 4
      %s22 = sphi 0, %s34
      %s23 = sphi 0, %s30
      %s24 = sphi 0, %s22
      %s25 = sphi 0, %s23
      %s26 = sphi 0, %s24
      %s27 = sphi 0, %s25
      %s37 = sphi 0, %s39
      %s40 = sphi 0, %s37
      %s41 = sphi 0, %s40
      %s57 = sphi 0, %s41
      %s73 = sphi 0, %s75
      %s76 = sphi 0, %s73
      %s77 = sphi 0, %s76
      %s93 = sphi 0, %s77
      %s97 = sphi 0, %s97
      %s99 = sphi 0, %s97
      %s100 = sphi 0, %s99
      %s114 = sphi 0, %s100
      %s118 = sphi 0, %s118
      %s120 = sphi 0, %s118
      %s121 = sphi 0, %s120
      %s135 = sphi 0, %s121
      %s139 = sphi 0, %s139
      %s141 = sphi 0, %s139
      %s142 = sphi 0, %s141
      %s156 = sphi 0, %s142
      %s164 = sphi 0, %s166
      %s167 = sphi 0, %s164
      %s168 = sphi 0, %s167
      %s184 = sphi 0, %s168
      %s190 = sphi 0, %s192
      %s193 = sphi 0, %s190
      %s194 = sphi 0, %s193
      %s210 = sphi 0, %s194
    $region4: #{sequence_encoder_forward.1} parent=1 // loop_header_branch
      %18 = sbr.rel (%p16) target = $region8
    $region5: #{sequence_encoder_forward.1} parent=1 // loop_body
      %s20 = ssub.s32 %s15, 1
      %s21 = ssub.s32 %s15, 2
      %s28 = sadd.s32 1, %s23
      %p29 = scmp.ge.s32.totalorder %s28, 2
      %s30 = scalar_select %p29, 0, %s28
      %s31 = sadd.s32 1, %s22
      %s32 = scalar_select %p29, %s31, %s22
      %p33 = scmp.ge.s32.totalorder %s32, 1
      %s34 = scalar_select %p33, 0, %s32
      %s35 = ssub.s32 %s22, %s34
      %p36 = scmp.eq.s32.totalorder %s35, 0
      %s38 = sadd.s32 %s37, 1
      %s39 = scalar_select %p36, %s37, %s38
      %p42 = pneg %p36
      %p43 = scmp.eq.s32.totalorder %s15, 1
      %p44 = por %p42, %p43
      %p45 = scmp.ne.s32.totalorder %s37, %s40
      %p46 = scmp.eq.s32.totalorder %s15, 0
      %p47 = por %p45, %p46
      %p48 = scmp.ne.s32.totalorder %s37, %s40
      %p49 = scmp.eq.s32.totalorder %s20, 1
      %p50 = por %p48, %p49
      %p51 = scmp.ne.s32.totalorder %s40, %s41
      %p52 = scmp.eq.s32.totalorder %s20, 0
      %p53 = por %p51, %p52
      %p54 = scmp.ne.s32.totalorder %s40, %s41
      %p55 = scmp.eq.s32.totalorder %s21, 1
      %p56 = por %p54, %p55
      %p58 = scmp.ne.s32.totalorder %s41, %s57
      %p59 = scmp.eq.s32.totalorder %s21, 0
      %p60 = por %p58, %p59
      %s61 = sld [smem:[#allocation4 + %s22]]
      %s62 = ssub.s32 %s61, 1
      %p63 = scmp.lt.s32.totalorder %s23, %s62
      %s64 = scalar_select %p63, %s23, %s62
      %s65 = sld [smem:[#allocation4 + %s34]]
      %s66 = ssub.s32 %s65, 1
      %p67 = scmp.lt.s32.totalorder %s30, %s66
      %s68 = scalar_select %p67, %s30, %s66
      %s69 = ssub.s32 %s22, %s34
      %s70 = ssub.s32 %s64, %s68
      %s71 = sor.u32 %s69, %s70
      %p72 = scmp.eq.s32.totalorder %s71, 0
      %s74 = sadd.s32 %s73, 1
      %s75 = scalar_select %p72, %s73, %s74
      %p78 = pneg %p72
      %p79 = scmp.eq.s32.totalorder %s15, 1
      %p80 = por %p78, %p79
      %p81 = scmp.ne.s32.totalorder %s73, %s76
      %p82 = scmp.eq.s32.totalorder %s15, 0
      %p83 = por %p81, %p82
      %p84 = scmp.ne.s32.totalorder %s73, %s76
      %p85 = scmp.eq.s32.totalorder %s20, 1
      %p86 = por %p84, %p85
      %p87 = scmp.ne.s32.totalorder %s76, %s77
      %p88 = scmp.eq.s32.totalorder %s20, 0
      %p89 = por %p87, %p88
      %p90 = scmp.ne.s32.totalorder %s76, %s77
      %p91 = scmp.eq.s32.totalorder %s21, 1
      %p92 = por %p90, %p91
      %p94 = scmp.ne.s32.totalorder %s77, %s93
      %p95 = scmp.eq.s32.totalorder %s21, 0
      %p96 = por %p94, %p95
      %s98 = sadd.s32 %s97, 1
      %p101 = scmp.eq.s32.totalorder %s15, 1
      %p102 = scmp.ne.s32.totalorder %s97, %s99
      %p103 = scmp.eq.s32.totalorder %s15, 0
      %p104 = por %p102, %p103
      %p105 = scmp.ne.s32.totalorder %s97, %s99
      %p106 = scmp.eq.s32.totalorder %s20, 1
      %p107 = por %p105, %p106
      %p108 = scmp.ne.s32.totalorder %s99, %s100
      %p109 = scmp.eq.s32.totalorder %s20, 0
      %p110 = por %p108, %p109
      %p111 = scmp.ne.s32.totalorder %s99, %s100
      %p112 = scmp.eq.s32.totalorder %s21, 1
      %p113 = por %p111, %p112
      %p115 = scmp.ne.s32.totalorder %s100, %s114
      %p116 = scmp.eq.s32.totalorder %s21, 0
      %p117 = por %p115, %p116
      %s119 = sadd.s32 %s118, 1
      %p122 = scmp.eq.s32.totalorder %s15, 1
      %p123 = scmp.ne.s32.totalorder %s118, %s120
      %p124 = scmp.eq.s32.totalorder %s15, 0
      %p125 = por %p123, %p124
      %p126 = scmp.ne.s32.totalorder %s118, %s120
      %p127 = scmp.eq.s32.totalorder %s20, 1
      %p128 = por %p126, %p127
      %p129 = scmp.ne.s32.totalorder %s120, %s121
      %p130 = scmp.eq.s32.totalorder %s20, 0
      %p131 = por %p129, %p130
      %p132 = scmp.ne.s32.totalorder %s120, %s121
      %p133 = scmp.eq.s32.totalorder %s21, 1
      %p134 = por %p132, %p133
      %p136 = scmp.ne.s32.totalorder %s121, %s135
      %p137 = scmp.eq.s32.totalorder %s21, 0
      %p138 = por %p136, %p137
      %s140 = sadd.s32 %s139, 1
      %p143 = scmp.eq.s32.totalorder %s15, 1
      %p144 = scmp.ne.s32.totalorder %s139, %s141
      %p145 = scmp.eq.s32.totalorder %s15, 0
      %p146 = por %p144, %p145
      %p147 = scmp.ne.s32.totalorder %s139, %s141
      %p148 = scmp.eq.s32.totalorder %s20, 1
      %p149 = por %p147, %p148
      %p150 = scmp.ne.s32.totalorder %s141, %s142
      %p151 = scmp.eq.s32.totalorder %s20, 0
      %p152 = por %p150, %p151
      %p153 = scmp.ne.s32.totalorder %s141, %s142
      %p154 = scmp.eq.s32.totalorder %s21, 1
      %p155 = por %p153, %p154
      %p157 = scmp.ne.s32.totalorder %s142, %s156
      %p158 = scmp.eq.s32.totalorder %s21, 0
      %p159 = por %p157, %p158
      %s160 = ssub.s32 %s22, %s34
      %s161 = ssub.s32 %s23, %s30
      %s162 = sor.u32 %s160, %s161
      %p163 = scmp.eq.s32.totalorder %s162, 0
      %s165 = sadd.s32 %s164, 1
      %s166 = scalar_select %p163, %s164, %s165
      %p169 = pneg %p163
      %p170 = scmp.eq.s32.totalorder %s15, 1
      %p171 = por %p169, %p170
      %p172 = scmp.ne.s32.totalorder %s164, %s167
      %p173 = scmp.eq.s32.totalorder %s15, 0
      %p174 = por %p172, %p173
      %p175 = scmp.ne.s32.totalorder %s164, %s167
      %p176 = scmp.eq.s32.totalorder %s20, 1
      %p177 = por %p175, %p176
      %p178 = scmp.ne.s32.totalorder %s167, %s168
      %p179 = scmp.eq.s32.totalorder %s20, 0
      %p180 = por %p178, %p179
      %p181 = scmp.ne.s32.totalorder %s167, %s168
      %p182 = scmp.eq.s32.totalorder %s21, 1
      %p183 = por %p181, %p182
      %p185 = scmp.ne.s32.totalorder %s168, %s184
      %p186 = scmp.eq.s32.totalorder %s21, 0
      %p187 = por %p185, %p186
      %s188 = ssub.s32 %s22, %s34
      %p189 = scmp.eq.s32.totalorder %s188, 0
      %s191 = sadd.s32 %s190, 1
      %s192 = scalar_select %p189, %s190, %s191
      %p195 = pneg %p189
      %p196 = scmp.eq.s32.totalorder %s15, 1
      %p197 = por %p195, %p196
      %p198 = scmp.ne.s32.totalorder %s190, %s193
      %p199 = scmp.eq.s32.totalorder %s15, 0
      %p200 = por %p198, %p199
      %p201 = scmp.ne.s32.totalorder %s190, %s193
      %p202 = scmp.eq.s32.totalorder %s20, 1
      %p203 = por %p201, %p202
      %p204 = scmp.ne.s32.totalorder %s193, %s194
      %p205 = scmp.eq.s32.totalorder %s20, 0
      %p206 = por %p204, %p205
      %p207 = scmp.ne.s32.totalorder %s193, %s194
      %p208 = scmp.eq.s32.totalorder %s21, 1
      %p209 = por %p207, %p208
      %p211 = scmp.ne.s32.totalorder %s194, %s210
      %p212 = scmp.eq.s32.totalorder %s21, 0
      %p213 = por %p211, %p212
      %p214 = scmp.le.s32.totalorder 1, %s15
      %p215 = scmp.lt.s32.totalorder %s15, 3
      %p216 = pnand %p214, %p215
      %p217 = pneg %p216
      // Predicated region
      $region9: #{sequence_encoder_forward.1} parent=5 // pred_check
        _
      $region10: #{sequence_encoder_forward.1} parent=5 // pred_check_branch
        %219 = sbr.rel (%p216) target = $region12
      $region11: #{sequence_encoder_forward.1} parent=5 // pred_region
        %s220 = ssub.s32 %s15, 1
        // Predicated region
        $region13: #{sequence_encoder_forward.1} parent=11 // pred_check
          %p221 = pneg %p53
        $region14: #{sequence_encoder_forward.1} parent=11 // pred_check_branch
          %223 = sbr.rel (%p221) target = $region16
        $region15: #{sequence_encoder_forward.1} parent=11 // pred_region
          %p224 = scmp.lt.s32.totalorder %s24, 0
          %s225 = scalar_select %p224, %s24, 0
          %s226 = smul.addr %s225, 8
          %s227 = scalar_lea.vmem %s1, %s226
        $region16: #{sequence_encoder_forward.1} parent=11 // pred_fallthru
          _
        // Predicated region
        $region17: #{sequence_encoder_forward.1} parent=11 // pred_check
          %p228 = pneg %p110
        $region18: #{sequence_encoder_forward.1} parent=11 // pred_check_branch
          %230 = sbr.rel (%p228) target = $region20
        $region19: #{sequence_encoder_forward.1} parent=11 // pred_region
          _
        $region20: #{sequence_encoder_forward.1} parent=11 // pred_fallthru
          _
        // Predicated region
        $region21: #{sequence_encoder_forward.1} parent=11 // pred_check
          %p231 = pneg %p131
        $region22: #{sequence_encoder_forward.1} parent=11 // pred_check_branch
          %233 = sbr.rel (%p231) target = $region24
        $region23: #{sequence_encoder_forward.1} parent=11 // pred_region
          _
        $region24: #{sequence_encoder_forward.1} parent=11 // pred_fallthru
          _
        // Predicated region
        $region25: #{sequence_encoder_forward.1} parent=11 // pred_check
          %p234 = pneg %p152
        $region26: #{sequence_encoder_forward.1} parent=11 // pred_check_branch
          %236 = sbr.rel (%p234) target = $region28
        $region27: #{sequence_encoder_forward.1} parent=11 // pred_region
          _
        $region28: #{sequence_encoder_forward.1} parent=11 // pred_fallthru
          _
      $region12: #{sequence_encoder_forward.1} parent=5 // pred_fallthru
        _
      %p237 = scmp.lt.s32.totalorder %s15, 2
      // Predicated region
      $region29: #{sequence_encoder_forward.1} parent=5 // pred_check
        %p238 = pneg %p237
      $region30: #{sequence_encoder_forward.1} parent=5 // pred_check_branch
        %240 = sbr.rel (%p238) target = $region32
      $region31: #{sequence_encoder_forward.1} parent=5 // pred_region
        // Predicated region
        $region33: #{sequence_encoder_forward.1} parent=31 // pred_check
          %p241 = pneg %p83
        $region34: #{sequence_encoder_forward.1} parent=31 // pred_check_branch
          %243 = sbr.rel (%p241) target = $region36
        $region35: #{sequence_encoder_forward.1} parent=31 // pred_region
          %s244 = sand.u32 %s73, 1
          %s245 = sand.u32 %s73, 1
          %s246 = smul.addr %s245, 64
          %s247 = scalar_lea.vmem [#allocation5], %s246
          %s248 = sld [smem:[#allocation4 + %s22]]
          %s249 = ssub.s32 %s248, 1
          %p250 = scmp.lt.s32.totalorder %s23, %s249
          %s251 = scalar_select %p250, %s23, %s249
          %s252 = smul.u32 8, %s22
          %s253 = smul.addr %s252, 2
          %s254 = sadd.s32 %s251, %s253
          %s255 = smul.addr %s254, 8
          %s256 = scalar_lea.vmem %s2, %s255
          // Predicated region
          $region37: #{sequence_encoder_forward.1} parent=35 // pred_check
            _
          $region38: #{sequence_encoder_forward.1} parent=35 // pred_check_branch
            %258 = sbr.rel (0) target = $region40
          $region39: #{sequence_encoder_forward.1} parent=35 // pred_region
            // Predicated region
            $region41: #{sequence_encoder_forward.1} parent=39 // pred_check
              _
            $region42: #{sequence_encoder_forward.1} parent=39 // pred_check_branch
              %260 = sbr.rel (0) target = $region44
            $region43: #{sequence_encoder_forward.1} parent=39 // pred_region
              // Predicated region
              $region56: #{sequence_encoder_forward.1} parent=43 // pred_check
                _
              $region57: #{sequence_encoder_forward.1} parent=43 // pred_check_branch
                %290 = sbr.rel (0) target = $region59
              $region58: #{sequence_encoder_forward.1} parent=43 // pred_region
                loop: start=0, step=1, limit=1
                $region60: #{sequence_encoder_forward.1} parent=58 // loop_pre_header
                  _
                $region61: #{sequence_encoder_forward.1} parent=58 // loop_header
                  %s292 = sphi 0, %s296
                  %p293 = scmp.ge.s32.totalorder %s292, 1
                  %s297 = sphi %s256, %s256
                  %s298 = sphi %s247, %s247
                $region62: #{sequence_encoder_forward.1} parent=58 // loop_header_branch
                  %295 = sbr.rel (%p293) target = $region66
                $region63: #{sequence_encoder_forward.1} parent=58 // loop_body
                  %v299 = vld [vmem:[%s297] sm:$0xff]
                  %300 = vst [vmem:[%s298] sm:$0xff] %v299
                  %v301 = vld [vmem:[%s297 + $0x10] sm:$0xff]
                  %302 = vst [vmem:[%s298 + $0x8] sm:$0xff] %v301
                  %v303 = vld [vmem:[%s297 + $0x20] sm:$0xff]
                  %304 = vst [vmem:[%s298 + $0x10] sm:$0xff] %v303
                  %v305 = vld [vmem:[%s297 + $0x30] sm:$0xff]
                  %306 = vst [vmem:[%s298 + $0x18] sm:$0xff] %v305
                  %v307 = vld [vmem:[%s297 + $0x40] sm:$0xff]
                  %308 = vst [vmem:[%s298 + $0x20] sm:$0xff] %v307
                  %v309 = vld [vmem:[%s297 + $0x50] sm:$0xff]
                  %310 = vst [vmem:[%s298 + $0x28] sm:$0xff] %v309
                  %v311 = vld [vmem:[%s297 + $0x60] sm:$0xff]
                  %312 = vst [vmem:[%s298 + $0x30] sm:$0xff] %v311
                  %v313 = vld [vmem:[%s297 + $0x70] sm:$0xff]
                  %314 = vst [vmem:[%s298 + $0x38] sm:$0xff] %v313
                $region64: #{sequence_encoder_forward.1} parent=58 // loop_footer
                  %s296 = sadd.s32 1, %s292
                $region65: #{sequence_encoder_forward.1} parent=58 // loop_footer_branch
                  %291 = sbr.rel target = $region61
                $region66: #{sequence_encoder_forward.1} parent=58 // loop_exit
                  _
              $region59: #{sequence_encoder_forward.1} parent=43 // pred_fallthru
                _
              // Predicated region
              $region67: #{sequence_encoder_forward.1} parent=43 // pred_check
                _
              $region68: #{sequence_encoder_forward.1} parent=43 // pred_check_branch
                %316 = sbr.rel target = $region70
              $region69: #{sequence_encoder_forward.1} parent=43 // pred_region
                _
              $region70: #{sequence_encoder_forward.1} parent=43 // pred_fallthru
                _
            $region44: #{sequence_encoder_forward.1} parent=39 // pred_fallthru
              _
            // Predicated region
            $region45: #{sequence_encoder_forward.1} parent=39 // pred_check
              _
            $region46: #{sequence_encoder_forward.1} parent=39 // pred_check_branch
              %262 = sbr.rel target = $region48
            $region47: #{sequence_encoder_forward.1} parent=39 // pred_region
              %s264 = ssub.s32 256, 1
              loop: start=0, step=1, limit=1
              $region49: #{sequence_encoder_forward.1} parent=47 // loop_pre_header
                _
              $region50: #{sequence_encoder_forward.1} parent=47 // loop_header
                %s266 = sphi 0, %s270
                %p267 = scmp.ge.s32.totalorder %s266, 1
                %s271 = sphi %s256, %s256
                %s272 = sphi %s247, %s247
              $region51: #{sequence_encoder_forward.1} parent=47 // loop_header_branch
                %269 = sbr.rel (%p267) target = $region55
              $region52: #{sequence_encoder_forward.1} parent=47 // loop_body
                %v273 = vld [vmem:[%s271] sm:%s264]
                %274 = vst [vmem:[%s272] sm:%s264] %v273
                %v275 = vld [vmem:[%s271 + $0x10] sm:%s264]
                %276 = vst [vmem:[%s272 + $0x8] sm:%s264] %v275
                %v277 = vld [vmem:[%s271 + $0x20] sm:%s264]
                %278 = vst [vmem:[%s272 + $0x10] sm:%s264] %v277
                %v279 = vld [vmem:[%s271 + $0x30] sm:%s264]
                %280 = vst [vmem:[%s272 + $0x18] sm:%s264] %v279
                %v281 = vld [vmem:[%s271 + $0x40] sm:%s264]
                %282 = vst [vmem:[%s272 + $0x20] sm:%s264] %v281
                %v283 = vld [vmem:[%s271 + $0x50] sm:%s264]
                %284 = vst [vmem:[%s272 + $0x28] sm:%s264] %v283
                %v285 = vld [vmem:[%s271 + $0x60] sm:%s264]
                %286 = vst [vmem:[%s272 + $0x30] sm:%s264] %v285
                %v287 = vld [vmem:[%s271 + $0x70] sm:%s264]
                %288 = vst [vmem:[%s272 + $0x38] sm:%s264] %v287
              $region53: #{sequence_encoder_forward.1} parent=47 // loop_footer
                %s270 = sadd.s32 1, %s266
              $region54: #{sequence_encoder_forward.1} parent=47 // loop_footer_branch
                %265 = sbr.rel target = $region50
              $region55: #{sequence_encoder_forward.1} parent=47 // loop_exit
                _
            $region48: #{sequence_encoder_forward.1} parent=39 // pred_fallthru
              _
          $region40: #{sequence_encoder_forward.1} parent=35 // pred_fallthru
            _
          %317 = vnop
        $region36: #{sequence_encoder_forward.1} parent=31 // pred_fallthru
          _
      $region32: #{sequence_encoder_forward.1} parent=5 // pred_fallthru
        _
      %p318 = scmp.le.s32.totalorder 1, %s15
      %p319 = scmp.lt.s32.totalorder %s15, 3
      %p320 = pnand %p318, %p319
      %p321 = pneg %p320
      // Predicated region
      $region71: #{sequence_encoder_forward.1} parent=5 // pred_check
        _
      $region72: #{sequence_encoder_forward.1} parent=5 // pred_check_branch
        %323 = sbr.rel (%p320) target = $region74
      $region73: #{sequence_encoder_forward.1} parent=5 // pred_region
        %s324 = ssub.s32 %s15, 1
        %s325 = sand.u32 %s76, 1
        %s326 = sand.u32 %s76, 1
        %s327 = smul.addr %s326, 64
        %s328 = scalar_lea.vmem [#allocation5], %s327
        // Predicated region
        $region75: #{sequence_encoder_forward.1} parent=73 // pred_check
          %p329 = pneg %p89
        $region76: #{sequence_encoder_forward.1} parent=73 // pred_check_branch
          %331 = sbr.rel (%p329) target = $region78
        $region77: #{sequence_encoder_forward.1} parent=73 // pred_region
          _
        $region78: #{sequence_encoder_forward.1} parent=73 // pred_fallthru
          _
        %p332 = scmp.lt.s32.totalorder %s24, 0
        %s333 = scalar_select %p332, %s24, 0
        %s334 = smul.addr %s333, 8
        %s335 = scalar_lea.vmem %s1, %s334
        %p336 = pneg %p53
        %p337 = pneg %p50
        %s338 = sand.u32 %s76, 1
        %s339 = sand.u32 %s76, 1
        %s340 = smul.addr %s339, 64
        %s341 = scalar_lea.vmem [#allocation5], %s340
        %p342 = pneg %p89
        %p343 = pneg %p86
        %p344 = pneg %p110
        %p345 = pneg %p107
        %p346 = pneg %p131
        %p347 = pneg %p128
        %p348 = pneg %p152
        %p349 = pneg %p149
        %p350 = pneg %p180
        %p351 = pneg %p177
        %s352 = sand.u32 %s167, 1
        %s353 = sand.u32 %s167, 1
        %s354 = smul.addr %s353, 64
        %s355 = scalar_lea.vmem [#allocation6], %s354
        %p356 = pneg %p206
        %p357 = pneg %p203
        %p358 = scmp.lt.s32.totalorder %s24, 0
        %s359 = scalar_select %p358, %s24, 0
        %s360 = smul.addr %s359, 8
        %s361 = scalar_lea.vmem %s7, %s360
        %p362 = scmp.lt.s32.totalorder %s24, 0
        %s363 = scalar_select %p362, %s24, 0
        %s364 = smul.addr %s363, 8
        %s365 = scalar_lea.vmem %s1, %s364
        %s366 = sld [smem:[#allocation4 + %s24]]
        %s367 = ssub.s32 %s366, 1
        %p368 = scmp.lt.s32.totalorder %s25, %s367
        %s369 = scalar_select %p368, %s25, %s367
        %s370 = smul.u32 8, %s24
        %s371 = smul.u32 8, %s24
        %p372 = scmp.lt.s32.totalorder %s24, 0
        %s373 = scalar_select %p372, %s24, 0
        %s374 = smul.addr %s373, 8
        %s375 = scalar_lea.vmem %s7, %s374
        %p376 = scmp.eq.s32.totalorder %s25, 0
        // Predicated region
        $region79: #{sequence_encoder_forward.1} parent=73 // pred_check
          %p377 = pneg %p376
        $region80: #{sequence_encoder_forward.1} parent=73 // pred_check_branch
          %379 = sbr.rel (%p377) target = $region82
        $region81: #{sequence_encoder_forward.1} parent=73 // pred_region
          %380 = vst [vmem:[#allocation2] sm:$0xff] 0.0
          %381 = vst [vmem:[%s375] sm:$0xff] 0.0
        $region82: #{sequence_encoder_forward.1} parent=73 // pred_fallthru
          _
        %s382 = sld [smem:[#allocation4 + %s24]]
        %p383 = scmp.lt.s32.totalorder %s25, %s382
        // Predicated region
        $region83: #{sequence_encoder_forward.1} parent=73 // pred_check
          %p384 = pneg %p383
        $region84: #{sequence_encoder_forward.1} parent=73 // pred_check_branch
          %386 = sbr.rel (%p384) target = $region86
        $region85: #{sequence_encoder_forward.1} parent=73 // pred_region
          %v387 = vld [vmem:[%s365] sm:$0xff]
          %s388 = smul.u32 %s25, 8
          %v389 = vlaneseq
          %v390 = vand.u32 %v389, 127
          %v391 = vstv %s388
          %v392 = vadd.s32 %v391, %v390
          %393 = vset.pattern.permute.xlu0 0
          %394 = vperm.xlu0 %393, %v387
          %v395 = vpop.permute.xlu0 %394
          %vm396 = vcmp.gt.s32.totalorder %v395, %v392
          %v397 = vadd.s32 %v392, 1
          %vm398 = vcmp.eq.s32.totalorder %v395, %v397
          %v399 = vld [vmem:[%s3] sm:$0xff]
          %v400 = vld [vmem:[%s3 + $0x8] sm:$0xff]
          %v401 = vld [vmem:[%s3 + $0x10] sm:$0xff]
          %v402 = vld [vmem:[%s3 + $0x18] sm:$0xff]
          %v403 = vld [vmem:[%s5] sm:$0xff]
          %v404 = vld [vmem:[%s5 + $0x8] sm:$0xff]
          %v405 = vld [vmem:[%s5 + $0x10] sm:$0xff]
          %v406 = vld [vmem:[%s5 + $0x18] sm:$0xff]
          %v407 = vld [vmem:[%s5 + $0x20] sm:$0xff]
          %v408 = vld [vmem:[%s5 + $0x28] sm:$0xff]
          %v409 = vld [vmem:[%s5 + $0x30] sm:$0xff]
          %v410 = vld [vmem:[%s5 + $0x38] sm:$0xff]
          %v411 = vld [vmem:[%s5 + $0x40] sm:$0xff]
          %v412 = vld [vmem:[%s5 + $0x48] sm:$0xff]
          %v413 = vld [vmem:[%s5 + $0x50] sm:$0xff]
          %v414 = vld [vmem:[%s5 + $0x58] sm:$0xff]
          %v415 = vld [vmem:[%s5 + $0x60] sm:$0xff]
          %v416 = vld [vmem:[%s5 + $0x68] sm:$0xff]
          %v417 = vld [vmem:[%s5 + $0x70] sm:$0xff]
          %v418 = vld [vmem:[%s5 + $0x78] sm:$0xff]
          %v419 = vld [vmem:[%s4] sm:$0x1]
          %v420 = vld [vmem:[#allocation2] sm:$0xff]
          %v421 = vld [vmem:[%s375] sm:$0xff]
          %v422 = vld [vmem:[%s328] sm:$0x1]
          %v423 = vld [vmem:[%s328 + $0x8] sm:$0x1]
          %v424 = vld [vmem:[%s328 + $0x10] sm:$0x1]
          %v425 = vld [vmem:[%s328 + $0x18] sm:$0x1]
          %v426 = vld [vmem:[%s328 + $0x20] sm:$0x1]
          %v427 = vld [vmem:[%s328 + $0x28] sm:$0x1]
          %v428 = vld [vmem:[%s328 + $0x30] sm:$0x1]
          %v429 = vld [vmem:[%s328 + $0x38] sm:$0x1]
          %v431 = vlaneseq
          %v432 = vshrl.u32 %v431, 7
          %v433 = vsub.s32 0, %v432
          %v434 = vrot.slane %v419, %v433
          %v444 = vrot.slane %v423, 7
          %vm445 = vcmask 1041409
          %v446 = vsel %vm445, %v444, %v422
          %v447 = vrot.slane %v424, 6
          %vm448 = vcmask 1042434
          %v449 = vsel %vm448, %v447, %v446
          %v450 = vrot.slane %v425, 5
          %vm451 = vcmask 1043459
          %v452 = vsel %vm451, %v450, %v449
          %v453 = vrot.slane %v426, 4
          %vm454 = vcmask 1044484
          %v455 = vsel %vm454, %v453, %v452
          %v456 = vrot.slane %v427, 3
          %vm457 = vcmask 1045509
          %v458 = vsel %vm457, %v456, %v455
          %v459 = vrot.slane %v428, 2
          %vm460 = vcmask 1046534
          %v461 = vsel %vm460, %v459, %v458
          %v462 = vrot.slane %v429, 1
          %vm463 = vcmask 1047559
          %v464 = vsel %vm463, %v462, %v461
          %vm465 = vcmask 261120
          %v466 = vsel %vm465, %v464, 0
          %468 = vmatprep.subr.mxu0 0.0
          %469 = vmatpush1.msra.mxu0 0.0
          %470 = vmatprep.subr.mxu0 0.0
          %471 = vmatpush1.msra.mxu0 0.0
          %472 = vmatprep.subr.mxu0 0.0
          %473 = vmatpush1.msra.mxu0 0.0
          %474 = vmatprep.subr.mxu0 0.0
          %475 = vmatpush1.msra.mxu0 0.0
          %476 = vmatprep.subr.mxu0 0.0
          %477 = vmatpush1.msra.mxu0 0.0
          %478 = vmatprep.subr.mxu0 0.0
          %479 = vmatpush1.msra.mxu0 0.0
          %480 = vmatprep.subr.mxu0 0.0
          %481 = vmatpush1.msra.mxu0 0.0
          %482 = vmatprep.subr.mxu0 0.0
          %483 = vmatpush1.msra.mxu0 0.0
          %484 = vmatprep.subr.mxu0 0.0
          %485 = vmatpush1.msra.mxu0 0.0
          %486 = vmatprep.subr.mxu0 0.0
          %487 = vmatpush1.msra.mxu0 0.0
          %488 = vmatprep.subr.mxu0 0.0
          %489 = vmatpush1.msra.mxu0 0.0
          %490 = vmatprep.subr.mxu0 0.0
          %491 = vmatpush1.msra.mxu0 0.0
          %492 = vmatprep.subr.mxu0 0.0
          %493 = vmatpush1.msra.mxu0 %v402
          %494 = vmatprep.subr.mxu0 0.0
          %495 = vmatpush1.msra.mxu0 %v401
          %496 = vmatprep.subr.mxu0 0.0
          %497 = vmatpush1.msra.mxu0 %v400
          %498 = vmatprep.subr.mxu0 0.0
          %499 = vmatpush1.msra.mxu0 %v399
          %500 = vmatprep.subr.mxu0 0.0
          %501 = vmatpush2.msra.mxu0 0.0
          %502 = vmatprep.subr.mxu0 0.0
          %503 = vmatpush2.msra.mxu0 0.0
          %504 = vmatprep.subr.mxu0 0.0
          %505 = vmatpush2.msra.mxu0 0.0
          %506 = vmatprep.subr.mxu0 0.0
          %507 = vmatpush2.msra.mxu0 0.0
          %508 = vmatprep.subr.mxu0 0.0
          %509 = vmatpush2.msra.mxu0 0.0
          %510 = vmatprep.subr.mxu0 0.0
          %511 = vmatpush2.msra.mxu0 0.0
          %512 = vmatprep.subr.mxu0 0.0
          %513 = vmatpush2.msra.mxu0 0.0
          %514 = vmatprep.subr.mxu0 0.0
          %515 = vmatpush2.msra.mxu0 0.0
          %516 = vmatprep.subr.mxu0 0.0
          %517 = vmatpush2.msra.mxu0 0.0
          %518 = vmatprep.subr.mxu0 0.0
          %519 = vmatpush2.msra.mxu0 0.0
          %520 = vmatprep.subr.mxu0 0.0
          %521 = vmatpush2.msra.mxu0 0.0
          %522 = vmatprep.subr.mxu0 0.0
          %523 = vmatpush2.msra.mxu0 0.0
          %524 = vmatprep.subr.mxu0 0.0
          %525 = vmatpush2.msra.mxu0 0.0
          %526 = vmatprep.subr.mxu0 0.0
          %527 = vmatpush2.msra.mxu0 0.0
          %528 = vmatprep.subr.mxu0 0.0
          %529 = vmatpush2.msra.mxu0 0.0
          %530 = vmatprep.subr.mxu0 0.0
          %531 = vmatpush2.msra.mxu0 0.0
          %532 = vmatprep.mubr.f32.mxu0 0.0
          %533 = vmatmul.mubr.f32.gmra.mxu0 %v466
          %v534 = vpop.f32.mrf.mxu0
          %v535 = vadd.f32 %v434, %v534
          %v536 = vpop.f32.mrf.mxu0
          %537 = vdwg.mxu0
          %538 = vmatprep.subr.mxu0 0.0
          %539 = vmatpush1.msra.mxu0 %v418
          %540 = vmatprep.subr.mxu0 0.0
          %541 = vmatpush1.msra.mxu0 %v417
          %542 = vmatprep.subr.mxu0 0.0
          %543 = vmatpush1.msra.mxu0 %v416
          %544 = vmatprep.subr.mxu0 0.0
          %545 = vmatpush1.msra.mxu0 %v415
          %546 = vmatprep.subr.mxu0 0.0
          %547 = vmatpush1.msra.mxu0 %v414
          %548 = vmatprep.subr.mxu0 0.0
          %549 = vmatpush1.msra.mxu0 %v413
          %550 = vmatprep.subr.mxu0 0.0
          %551 = vmatpush1.msra.mxu0 %v412
          %552 = vmatprep.subr.mxu0 0.0
          %553 = vmatpush1.msra.mxu0 %v411
          %554 = vmatprep.subr.mxu0 0.0
          %555 = vmatpush1.msra.mxu0 %v410
          %556 = vmatprep.subr.mxu0 0.0
          %557 = vmatpush1.msra.mxu0 %v409
          %558 = vmatprep.subr.mxu0 0.0
          %559 = vmatpush1.msra.mxu0 %v408
          %560 = vmatprep.subr.mxu0 0.0
          %561 = vmatpush1.msra.mxu0 %v407
          %562 = vmatprep.subr.mxu0 0.0
          %563 = vmatpush1.msra.mxu0 %v406
          %564 = vmatprep.subr.mxu0 0.0
          %565 = vmatpush1.msra.mxu0 %v405
          %566 = vmatprep.subr.mxu0 0.0
          %567 = vmatpush1.msra.mxu0 %v404
          %568 = vmatprep.subr.mxu0 0.0
          %569 = vmatpush1.msra.mxu0 %v403
          %570 = vmatprep.subr.mxu0 0.0
          %571 = vmatpush2.msra.mxu0 0.0
          %572 = vmatprep.subr.mxu0 0.0
          %573 = vmatpush2.msra.mxu0 0.0
          %574 = vmatprep.subr.mxu0 0.0
          %575 = vmatpush2.msra.mxu0 0.0
          %576 = vmatprep.subr.mxu0 0.0
          %577 = vmatpush2.msra.mxu0 0.0
          %578 = vmatprep.subr.mxu0 0.0
          %579 = vmatpush2.msra.mxu0 0.0
          %580 = vmatprep.subr.mxu0 0.0
          %581 = vmatpush2.msra.mxu0 0.0
          %582 = vmatprep.subr.mxu0 0.0
          %583 = vmatpush2.msra.mxu0 0.0
          %584 = vmatprep.subr.mxu0 0.0
          %585 = vmatpush2.msra.mxu0 0.0
          %586 = vmatprep.subr.mxu0 0.0
          %587 = vmatpush2.msra.mxu0 0.0
          %588 = vmatprep.subr.mxu0 0.0
          %589 = vmatpush2.msra.mxu0 0.0
          %590 = vmatprep.subr.mxu0 0.0
          %591 = vmatpush2.msra.mxu0 0.0
          %592 = vmatprep.subr.mxu0 0.0
          %593 = vmatpush2.msra.mxu0 0.0
          %594 = vmatprep.subr.mxu0 0.0
          %595 = vmatpush2.msra.mxu0 0.0
          %596 = vmatprep.subr.mxu0 0.0
          %597 = vmatpush2.msra.mxu0 0.0
          %598 = vmatprep.subr.mxu0 0.0
          %599 = vmatpush2.msra.mxu0 0.0
          %600 = vmatprep.subr.mxu0 0.0
          %601 = vmatpush2.msra.mxu0 0.0
          %602 = vmatprep.mubr.f32.mxu0 0.0
          %603 = vmatmul.mubr.f32.gmra.mxu0 %v420
          %v604 = vpop.f32.mrf.mxu0
          %v605 = vadd.f32 0.0, %v604
          %v606 = vpop.f32.mrf.mxu0
          %607 = vdwg.mxu0
          %v608 = vadd.f32 %v535, %v605
          %v609 = vtanh.pop %v608
          %v610 = vsel %vm396, 1, 0
          %611 = vset.pattern.permute.xlu0 0
          %612 = vperm.xlu0 %611, %v610
          %v613 = vpop.permute.xlu0 %612
          %vm614 = vcmp.eq.s32.totalorder %v613, 1
          %v615 = vsel %vm614, %v609, 0.0
          %v617 = vcombine.high %v615, %v615
          %v619 = vunpack.c.l.s4 1966171168
          %v620 = vunpack.c.0.s8 %v619
          %v621 = vlaneseq
          %v622 = vshrl.u32 %v621, 7
          %v623 = vsub.s32 %v620, %v622
          %v624 = vrot.slane %v615, %v623
          %v626 = vunpack.c.l.s4 1966171168
          %v627 = vunpack.c.0.s8 %v626
          %v628 = vlaneseq
          %v629 = vshrl.u32 %v628, 7
          %v630 = vsub.s32 %v627, %v629
          %v631 = vrot.slane %v617, %v630
          %v632 = vcombine.high %v624, %v624
          %v633 = vcombine.high %v631, %v631
          %v635 = vunpack.c.l.s4 1966171168
          %v636 = vunpack.c.0.s8 %v635
          %v637 = vlaneseq
          %v638 = vshrl.u32 %v637, 7
          %v639 = vsub.s32 %v636, %v638
          %v640 = vrot.slane %v624, %v639
          %v642 = vunpack.c.l.s4 1966171168
          %v643 = vunpack.c.0.s8 %v642
          %v644 = vlaneseq
          %v645 = vshrl.u32 %v644, 7
          %v646 = vsub.s32 %v643, %v645
          %v647 = vrot.slane %v631, %v646
          %v649 = vunpack.c.l.s4 1966171168
          %v650 = vunpack.c.0.s8 %v649
          %v651 = vlaneseq
          %v652 = vshrl.u32 %v651, 7
          %v653 = vsub.s32 %v650, %v652
          %v654 = vrot.slane %v632, %v653
          %v656 = vunpack.c.l.s4 1966171168
          %v657 = vunpack.c.0.s8 %v656
          %v658 = vlaneseq
          %v659 = vshrl.u32 %v658, 7
          %v660 = vsub.s32 %v657, %v659
          %v661 = vrot.slane %v633, %v660
          %v662 = vcombine.high %v640, %v640
          %v663 = vcombine.high %v647, %v647
          %v664 = vcombine.high %v654, %v654
          %v665 = vcombine.high %v661, %v661
          %674 = vst [vmem:[%s355] sm:$0x1] %v640
          %675 = vst [vmem:[%s355 + $0x8] sm:$0x1] %v654
          %676 = vst [vmem:[%s355 + $0x10] sm:$0x1] %v662
          %677 = vst [vmem:[%s355 + $0x18] sm:$0x1] %v664
          %678 = vst [vmem:[%s355 + $0x20] sm:$0x1] %v647
          %679 = vst [vmem:[%s355 + $0x28] sm:$0x1] %v661
          %680 = vst [vmem:[%s355 + $0x30] sm:$0x1] %v663
          %681 = vst [vmem:[%s355 + $0x38] sm:$0x1] %v665
          %v682 = vsel %vm398, 1, 0
          %683 = vset.pattern.permute.xlu0 0
          %684 = vperm.xlu0 %683, %v682
          %v685 = vpop.permute.xlu0 %684
          %vm686 = vcmp.eq.s32.totalorder %v685, 1
          %v687 = vsel %vm686, %v609, %v421
          %v688 = vld [vmem:[%s328 + $0x1] sm:$0x1]
          %v689 = vld [vmem:[%s328 + $0x9] sm:$0x1]
          %v690 = vld [vmem:[%s328 + $0x11] sm:$0x1]
          %v691 = vld [vmem:[%s328 + $0x19] sm:$0x1]
          %v692 = vld [vmem:[%s328 + $0x21] sm:$0x1]
          %v693 = vld [vmem:[%s328 + $0x29] sm:$0x1]
          %v694 = vld [vmem:[%s328 + $0x31] sm:$0x1]
          %v695 = vld [vmem:[%s328 + $0x39] sm:$0x1]
          %v704 = vrot.slane %v689, 7
          %v705 = vsel %vm445, %v704, %v688
          %v706 = vrot.slane %v690, 6
          %v707 = vsel %vm448, %v706, %v705
          %v708 = vrot.slane %v691, 5
          %v709 = vsel %vm451, %v708, %v707
          %v710 = vrot.slane %v692, 4
          %v711 = vsel %vm454, %v710, %v709
          %v712 = vrot.slane %v693, 3
          %v713 = vsel %vm457, %v712, %v711
          %v714 = vrot.slane %v694, 2
          %v715 = vsel %vm460, %v714, %v713
          %v716 = vrot.slane %v695, 1
          %v717 = vsel %vm463, %v716, %v715
          %v718 = vsel %vm465, %v717, 0
          %720 = vmatprep.subr.mxu0 0.0
          %721 = vmatpush1.msra.mxu0 0.0
          %722 = vmatprep.subr.mxu0 0.0
          %723 = vmatpush1.msra.mxu0 0.0
          %724 = vmatprep.subr.mxu0 0.0
          %725 = vmatpush1.msra.mxu0 0.0
          %726 = vmatprep.subr.mxu0 0.0
          %727 = vmatpush1.msra.mxu0 0.0
          %728 = vmatprep.subr.mxu0 0.0
          %729 = vmatpush1.msra.mxu0 0.0
          %730 = vmatprep.subr.mxu0 0.0
          %731 = vmatpush1.msra.mxu0 0.0
          %732 = vmatprep.subr.mxu0 0.0
          %733 = vmatpush1.msra.mxu0 0.0
          %734 = vmatprep.subr.mxu0 0.0
          %735 = vmatpush1.msra.mxu0 0.0
          %736 = vmatprep.subr.mxu0 0.0
          %737 = vmatpush1.msra.mxu0 0.0
          %738 = vmatprep.subr.mxu0 0.0
          %739 = vmatpush1.msra.mxu0 0.0
          %740 = vmatprep.subr.mxu0 0.0
          %741 = vmatpush1.msra.mxu0 0.0
          %742 = vmatprep.subr.mxu0 0.0
          %743 = vmatpush1.msra.mxu0 0.0
          %744 = vmatprep.subr.mxu0 0.0
          %745 = vmatpush1.msra.mxu0 %v402
          %746 = vmatprep.subr.mxu0 0.0
          %747 = vmatpush1.msra.mxu0 %v401
          %748 = vmatprep.subr.mxu0 0.0
          %749 = vmatpush1.msra.mxu0 %v400
          %750 = vmatprep.subr.mxu0 0.0
          %751 = vmatpush1.msra.mxu0 %v399
          %752 = vmatprep.subr.mxu0 0.0
          %753 = vmatpush2.msra.mxu0 0.0
          %754 = vmatprep.subr.mxu0 0.0
          %755 = vmatpush2.msra.mxu0 0.0
          %756 = vmatprep.subr.mxu0 0.0
          %757 = vmatpush2.msra.mxu0 0.0
          %758 = vmatprep.subr.mxu0 0.0
          %759 = vmatpush2.msra.mxu0 0.0
          %760 = vmatprep.subr.mxu0 0.0
          %761 = vmatpush2.msra.mxu0 0.0
          %762 = vmatprep.subr.mxu0 0.0
          %763 = vmatpush2.msra.mxu0 0.0
          %764 = vmatprep.subr.mxu0 0.0
          %765 = vmatpush2.msra.mxu0 0.0
          %766 = vmatprep.subr.mxu0 0.0
          %767 = vmatpush2.msra.mxu0 0.0
          %768 = vmatprep.subr.mxu0 0.0
          %769 = vmatpush2.msra.mxu0 0.0
          %770 = vmatprep.subr.mxu0 0.0
          %771 = vmatpush2.msra.mxu0 0.0
          %772 = vmatprep.subr.mxu0 0.0
          %773 = vmatpush2.msra.mxu0 0.0
          %774 = vmatprep.subr.mxu0 0.0
          %775 = vmatpush2.msra.mxu0 0.0
          %776 = vmatprep.subr.mxu0 0.0
          %777 = vmatpush2.msra.mxu0 0.0
          %778 = vmatprep.subr.mxu0 0.0
          %779 = vmatpush2.msra.mxu0 0.0
          %780 = vmatprep.subr.mxu0 0.0
          %781 = vmatpush2.msra.mxu0 0.0
          %782 = vmatprep.subr.mxu0 0.0
          %783 = vmatpush2.msra.mxu0 0.0
          %784 = vmatprep.mubr.f32.mxu0 0.0
          %785 = vmatmul.mubr.f32.gmra.mxu0 %v718
          %v786 = vpop.f32.mrf.mxu0
          %v787 = vadd.f32 %v434, %v786
          %v788 = vpop.f32.mrf.mxu0
          %789 = vdwg.mxu0
          %790 = vmatprep.subr.mxu0 0.0
          %791 = vmatpush1.msra.mxu0 %v418
          %792 = vmatprep.subr.mxu0 0.0
          %793 = vmatpush1.msra.mxu0 %v417
          %794 = vmatprep.subr.mxu0 0.0
          %795 = vmatpush1.msra.mxu0 %v416
          %796 = vmatprep.subr.mxu0 0.0
          %797 = vmatpush1.msra.mxu0 %v415
          %798 = vmatprep.subr.mxu0 0.0
          %799 = vmatpush1.msra.mxu0 %v414
          %800 = vmatprep.subr.mxu0 0.0
          %801 = vmatpush1.msra.mxu0 %v413
          %802 = vmatprep.subr.mxu0 0.0
          %803 = vmatpush1.msra.mxu0 %v412
          %804 = vmatprep.subr.mxu0 0.0
          %805 = vmatpush1.msra.mxu0 %v411
          %806 = vmatprep.subr.mxu0 0.0
          %807 = vmatpush1.msra.mxu0 %v410
          %808 = vmatprep.subr.mxu0 0.0
          %809 = vmatpush1.msra.mxu0 %v409
          %810 = vmatprep.subr.mxu0 0.0
          %811 = vmatpush1.msra.mxu0 %v408
          %812 = vmatprep.subr.mxu0 0.0
          %813 = vmatpush1.msra.mxu0 %v407
          %814 = vmatprep.subr.mxu0 0.0
          %815 = vmatpush1.msra.mxu0 %v406
          %816 = vmatprep.subr.mxu0 0.0
          %817 = vmatpush1.msra.mxu0 %v405
          %818 = vmatprep.subr.mxu0 0.0
          %819 = vmatpush1.msra.mxu0 %v404
          %820 = vmatprep.subr.mxu0 0.0
          %821 = vmatpush1.msra.mxu0 %v403
          %822 = vmatprep.subr.mxu0 0.0
          %823 = vmatpush2.msra.mxu0 0.0
          %824 = vmatprep.subr.mxu0 0.0
          %825 = vmatpush2.msra.mxu0 0.0
          %826 = vmatprep.subr.mxu0 0.0
          %827 = vmatpush2.msra.mxu0 0.0
          %828 = vmatprep.subr.mxu0 0.0
          %829 = vmatpush2.msra.mxu0 0.0
          %830 = vmatprep.subr.mxu0 0.0
          %831 = vmatpush2.msra.mxu0 0.0
          %832 = vmatprep.subr.mxu0 0.0
          %833 = vmatpush2.msra.mxu0 0.0
          %834 = vmatprep.subr.mxu0 0.0
          %835 = vmatpush2.msra.mxu0 0.0
          %836 = vmatprep.subr.mxu0 0.0
          %837 = vmatpush2.msra.mxu0 0.0
          %838 = vmatprep.subr.mxu0 0.0
          %839 = vmatpush2.msra.mxu0 0.0
          %840 = vmatprep.subr.mxu0 0.0
          %841 = vmatpush2.msra.mxu0 0.0
          %842 = vmatprep.subr.mxu0 0.0
          %843 = vmatpush2.msra.mxu0 0.0
          %844 = vmatprep.subr.mxu0 0.0
          %845 = vmatpush2.msra.mxu0 0.0
          %846 = vmatprep.subr.mxu0 0.0
          %847 = vmatpush2.msra.mxu0 0.0
          %848 = vmatprep.subr.mxu0 0.0
          %849 = vmatpush2.msra.mxu0 0.0
          %850 = vmatprep.subr.mxu0 0.0
          %851 = vmatpush2.msra.mxu0 0.0
          %852 = vmatprep.subr.mxu0 0.0
          %853 = vmatpush2.msra.mxu0 0.0
          %854 = vmatprep.mubr.f32.mxu0 0.0
          %855 = vmatmul.mubr.f32.gmra.mxu0 %v609
          %v856 = vpop.f32.mrf.mxu0
          %v857 = vadd.f32 0.0, %v856
          %v858 = vpop.f32.mrf.mxu0
          %859 = vdwg.mxu0
          %v860 = vadd.f32 %v787, %v857
          %v861 = vtanh.pop %v860
          %862 = vset.pattern.permute.xlu0 1
          %863 = vperm.xlu0 %862, %v610
          %v864 = vpop.permute.xlu0 %863
          %vm865 = vcmp.eq.s32.totalorder %v864, 1
          %v866 = vsel %vm865, %v861, 0.0
          %v868 = vcombine.high %v866, %v866
          %v870 = vunpack.c.l.s4 1966171168
          %v871 = vunpack.c.0.s8 %v870
          %v872 = vlaneseq
          %v873 = vshrl.u32 %v872, 7
          %v874 = vsub.s32 %v871, %v873
          %v875 = vrot.slane %v866, %v874
          %v877 = vunpack.c.l.s4 1966171168
          %v878 = vunpack.c.0.s8 %v877
          %v879 = vlaneseq
          %v880 = vshrl.u32 %v879, 7
          %v881 = vsub.s32 %v878, %v880
          %v882 = vrot.slane %v868, %v881
          %v883 = vcombine.high %v875, %v875
          %v884 = vcombine.high %v882, %v882
          %v886 = vunpack.c.l.s4 1966171168
          %v887 = vunpack.c.0.s8 %v886
          %v888 = vlaneseq
          %v889 = vshrl.u32 %v888, 7
          %v890 = vsub.s32 %v887, %v889
          %v891 = vrot.slane %v875, %v890
          %v893 = vunpack.c.l.s4 1966171168
          %v894 = vunpack.c.0.s8 %v893
          %v895 = vlaneseq
          %v896 = vshrl.u32 %v895, 7
          %v897 = vsub.s32 %v894, %v896
          %v898 = vrot.slane %v882, %v897
          %v900 = vunpack.c.l.s4 1966171168
          %v901 = vunpack.c.0.s8 %v900
          %v902 = vlaneseq
          %v903 = vshrl.u32 %v902, 7
          %v904 = vsub.s32 %v901, %v903
          %v905 = vrot.slane %v883, %v904
          %v907 = vunpack.c.l.s4 1966171168
          %v908 = vunpack.c.0.s8 %v907
          %v909 = vlaneseq
          %v910 = vshrl.u32 %v909, 7
          %v911 = vsub.s32 %v908, %v910
          %v912 = vrot.slane %v884, %v911
          %v913 = vcombine.high %v891, %v891
          %v914 = vcombine.high %v898, %v898
          %v915 = vcombine.high %v905, %v905
          %v916 = vcombine.high %v912, %v912
          %925 = vst [vmem:[%s355 + $0x1] sm:$0x1] %v891
          %926 = vst [vmem:[%s355 + $0x9] sm:$0x1] %v905
          %927 = vst [vmem:[%s355 + $0x11] sm:$0x1] %v913
          %928 = vst [vmem:[%s355 + $0x19] sm:$0x1] %v915
          %929 = vst [vmem:[%s355 + $0x21] sm:$0x1] %v898
          %930 = vst [vmem:[%s355 + $0x29] sm:$0x1] %v912
          %931 = vst [vmem:[%s355 + $0x31] sm:$0x1] %v914
          %932 = vst [vmem:[%s355 + $0x39] sm:$0x1] %v916
          %933 = vset.pattern.permute.xlu0 1
          %934 = vperm.xlu0 %933, %v682
          %v935 = vpop.permute.xlu0 %934
          %vm936 = vcmp.eq.s32.totalorder %v935, 1
          %v937 = vsel %vm936, %v861, %v687
          %v938 = vld [vmem:[%s328 + $0x2] sm:$0x1]
          %v939 = vld [vmem:[%s328 + $0xa] sm:$0x1]
          %v940 = vld [vmem:[%s328 + $0x12] sm:$0x1]
          %v941 = vld [vmem:[%s328 + $0x1a] sm:$0x1]
          %v942 = vld [vmem:[%s328 + $0x22] sm:$0x1]
          %v943 = vld [vmem:[%s328 + $0x2a] sm:$0x1]
          %v944 = vld [vmem:[%s328 + $0x32] sm:$0x1]
          %v945 = vld [vmem:[%s328 + $0x3a] sm:$0x1]
          %v954 = vrot.slane %v939, 7
          %v955 = vsel %vm445, %v954, %v938
          %v956 = vrot.slane %v940, 6
          %v957 = vsel %vm448, %v956, %v955
          %v958 = vrot.slane %v941, 5
          %v959 = vsel %vm451, %v958, %v957
          %v960 = vrot.slane %v942, 4
          %v961 = vsel %vm454, %v960, %v959
          %v962 = vrot.slane %v943, 3
          %v963 = vsel %vm457, %v962, %v961
          %v964 = vrot.slane %v944, 2
          %v965 = vsel %vm460, %v964, %v963
          %v966 = vrot.slane %v945, 1
          %v967 = vsel %vm463, %v966, %v965
          %v968 = vsel %vm465, %v967, 0
          %970 = vmatprep.subr.mxu0 0.0
          %971 = vmatpush1.msra.mxu0 0.0
          %972 = vmatprep.subr.mxu0 0.0
          %973 = vmatpush1.msra.mxu0 0.0
          %974 = vmatprep.subr.mxu0 0.0
          %975 = vmatpush1.msra.mxu0 0.0
          %976 = vmatprep.subr.mxu0 0.0
          %977 = vmatpush1.msra.mxu0 0.0
          %978 = vmatprep.subr.mxu0 0.0
          %979 = vmatpush1.msra.mxu0 0.0
          %980 = vmatprep.subr.mxu0 0.0
          %981 = vmatpush1.msra.mxu0 0.0
          %982 = vmatprep.subr.mxu0 0.0
          %983 = vmatpush1.msra.mxu0 0.0
          %984 = vmatprep.subr.mxu0 0.0
          %985 = vmatpush1.msra.mxu0 0.0
          %986 = vmatprep.subr.mxu0 0.0
          %987 = vmatpush1.msra.mxu0 0.0
          %988 = vmatprep.subr.mxu0 0.0
          %989 = vmatpush1.msra.mxu0 0.0
          %990 = vmatprep.subr.mxu0 0.0
          %991 = vmatpush1.msra.mxu0 0.0
          %992 = vmatprep.subr.mxu0 0.0
          %993 = vmatpush1.msra.mxu0 0.0
          %994 = vmatprep.subr.mxu0 0.0
          %995 = vmatpush1.msra.mxu0 %v402
          %996 = vmatprep.subr.mxu0 0.0
          %997 = vmatpush1.msra.mxu0 %v401
          %998 = vmatprep.subr.mxu0 0.0
          %999 = vmatpush1.msra.mxu0 %v400
          %1000 = vmatprep.subr.mxu0 0.0
          %1001 = vmatpush1.msra.mxu0 %v399
          %1002 = vmatprep.subr.mxu0 0.0
          %1003 = vmatpush2.msra.mxu0 0.0
          %1004 = vmatprep.subr.mxu0 0.0
          %1005 = vmatpush2.msra.mxu0 0.0
          %1006 = vmatprep.subr.mxu0 0.0
          %1007 = vmatpush2.msra.mxu0 0.0
          %1008 = vmatprep.subr.mxu0 0.0
          %1009 = vmatpush2.msra.mxu0 0.0
          %1010 = vmatprep.subr.mxu0 0.0
          %1011 = vmatpush2.msra.mxu0 0.0
          %1012 = vmatprep.subr.mxu0 0.0
          %1013 = vmatpush2.msra.mxu0 0.0
          %1014 = vmatprep.subr.mxu0 0.0
          %1015 = vmatpush2.msra.mxu0 0.0
          %1016 = vmatprep.subr.mxu0 0.0
          %1017 = vmatpush2.msra.mxu0 0.0
          %1018 = vmatprep.subr.mxu0 0.0
          %1019 = vmatpush2.msra.mxu0 0.0
          %1020 = vmatprep.subr.mxu0 0.0
          %1021 = vmatpush2.msra.mxu0 0.0
          %1022 = vmatprep.subr.mxu0 0.0
          %1023 = vmatpush2.msra.mxu0 0.0
          %1024 = vmatprep.subr.mxu0 0.0
          %1025 = vmatpush2.msra.mxu0 0.0
          %1026 = vmatprep.subr.mxu0 0.0
          %1027 = vmatpush2.msra.mxu0 0.0
          %1028 = vmatprep.subr.mxu0 0.0
          %1029 = vmatpush2.msra.mxu0 0.0
          %1030 = vmatprep.subr.mxu0 0.0
          %1031 = vmatpush2.msra.mxu0 0.0
          %1032 = vmatprep.subr.mxu0 0.0
          %1033 = vmatpush2.msra.mxu0 0.0
          %1034 = vmatprep.mubr.f32.mxu0 0.0
          %1035 = vmatmul.mubr.f32.gmra.mxu0 %v968
          %v1036 = vpop.f32.mrf.mxu0
          %v1037 = vadd.f32 %v434, %v1036
          %v1038 = vpop.f32.mrf.mxu0
          %1039 = vdwg.mxu0
          %1040 = vmatprep.subr.mxu0 0.0
          %1041 = vmatpush1.msra.mxu0 %v418
          %1042 = vmatprep.subr.mxu0 0.0
          %1043 = vmatpush1.msra.mxu0 %v417
          %1044 = vmatprep.subr.mxu0 0.0
          %1045 = vmatpush1.msra.mxu0 %v416
          %1046 = vmatprep.subr.mxu0 0.0
          %1047 = vmatpush1.msra.mxu0 %v415
          %1048 = vmatprep.subr.mxu0 0.0
          %1049 = vmatpush1.msra.mxu0 %v414
          %1050 = vmatprep.subr.mxu0 0.0
          %1051 = vmatpush1.msra.mxu0 %v413
          %1052 = vmatprep.subr.mxu0 0.0
          %1053 = vmatpush1.msra.mxu0 %v412
          %1054 = vmatprep.subr.mxu0 0.0
          %1055 = vmatpush1.msra.mxu0 %v411
          %1056 = vmatprep.subr.mxu0 0.0
          %1057 = vmatpush1.msra.mxu0 %v410
          %1058 = vmatprep.subr.mxu0 0.0
          %1059 = vmatpush1.msra.mxu0 %v409
          %1060 = vmatprep.subr.mxu0 0.0
          %1061 = vmatpush1.msra.mxu0 %v408
          %1062 = vmatprep.subr.mxu0 0.0
          %1063 = vmatpush1.msra.mxu0 %v407
          %1064 = vmatprep.subr.mxu0 0.0
          %1065 = vmatpush1.msra.mxu0 %v406
          %1066 = vmatprep.subr.mxu0 0.0
          %1067 = vmatpush1.msra.mxu0 %v405
          %1068 = vmatprep.subr.mxu0 0.0
          %1069 = vmatpush1.msra.mxu0 %v404
          %1070 = vmatprep.subr.mxu0 0.0
          %1071 = vmatpush1.msra.mxu0 %v403
          %1072 = vmatprep.subr.mxu0 0.0
          %1073 = vmatpush2.msra.mxu0 0.0
          %1074 = vmatprep.subr.mxu0 0.0
          %1075 = vmatpush2.msra.mxu0 0.0
          %1076 = vmatprep.subr.mxu0 0.0
          %1077 = vmatpush2.msra.mxu0 0.0
          %1078 = vmatprep.subr.mxu0 0.0
          %1079 = vmatpush2.msra.mxu0 0.0
          %1080 = vmatprep.subr.mxu0 0.0
          %1081 = vmatpush2.msra.mxu0 0.0
          %1082 = vmatprep.subr.mxu0 0.0
          %1083 = vmatpush2.msra.mxu0 0.0
          %1084 = vmatprep.subr.mxu0 0.0
          %1085 = vmatpush2.msra.mxu0 0.0
          %1086 = vmatprep.subr.mxu0 0.0
          %1087 = vmatpush2.msra.mxu0 0.0
          %1088 = vmatprep.subr.mxu0 0.0
          %1089 = vmatpush2.msra.mxu0 0.0
          %1090 = vmatprep.subr.mxu0 0.0
          %1091 = vmatpush2.msra.mxu0 0.0
          %1092 = vmatprep.subr.mxu0 0.0
          %1093 = vmatpush2.msra.mxu0 0.0
          %1094 = vmatprep.subr.mxu0 0.0
          %1095 = vmatpush2.msra.mxu0 0.0
          %1096 = vmatprep.subr.mxu0 0.0
          %1097 = vmatpush2.msra.mxu0 0.0
          %1098 = vmatprep.subr.mxu0 0.0
          %1099 = vmatpush2.msra.mxu0 0.0
          %1100 = vmatprep.subr.mxu0 0.0
          %1101 = vmatpush2.msra.mxu0 0.0
          %1102 = vmatprep.subr.mxu0 0.0
          %1103 = vmatpush2.msra.mxu0 0.0
          %1104 = vmatprep.mubr.f32.mxu0 0.0
          %1105 = vmatmul.mubr.f32.gmra.mxu0 %v861
          %v1106 = vpop.f32.mrf.mxu0
          %v1107 = vadd.f32 0.0, %v1106
          %v1108 = vpop.f32.mrf.mxu0
          %1109 = vdwg.mxu0
          %v1110 = vadd.f32 %v1037, %v1107
          %v1111 = vtanh.pop %v1110
          %1112 = vset.pattern.permute.xlu0 2
          %1113 = vperm.xlu0 %1112, %v610
          %v1114 = vpop.permute.xlu0 %1113
          %vm1115 = vcmp.eq.s32.totalorder %v1114, 1
          %v1116 = vsel %vm1115, %v1111, 0.0
          %v1118 = vcombine.high %v1116, %v1116
          %v1120 = vunpack.c.l.s4 1966171168
          %v1121 = vunpack.c.0.s8 %v1120
          %v1122 = vlaneseq
          %v1123 = vshrl.u32 %v1122, 7
          %v1124 = vsub.s32 %v1121, %v1123
          %v1125 = vrot.slane %v1116, %v1124
          %v1127 = vunpack.c.l.s4 1966171168
          %v1128 = vunpack.c.0.s8 %v1127
          %v1129 = vlaneseq
          %v1130 = vshrl.u32 %v1129, 7
          %v1131 = vsub.s32 %v1128, %v1130
          %v1132 = vrot.slane %v1118, %v1131
          %v1133 = vcombine.high %v1125, %v1125
          %v1134 = vcombine.high %v1132, %v1132
          %v1136 = vunpack.c.l.s4 1966171168
          %v1137 = vunpack.c.0.s8 %v1136
          %v1138 = vlaneseq
          %v1139 = vshrl.u32 %v1138, 7
          %v1140 = vsub.s32 %v1137, %v1139
          %v1141 = vrot.slane %v1125, %v1140
          %v1143 = vunpack.c.l.s4 1966171168
          %v1144 = vunpack.c.0.s8 %v1143
          %v1145 = vlaneseq
          %v1146 = vshrl.u32 %v1145, 7
          %v1147 = vsub.s32 %v1144, %v1146
          %v1148 = vrot.slane %v1132, %v1147
          %v1150 = vunpack.c.l.s4 1966171168
          %v1151 = vunpack.c.0.s8 %v1150
          %v1152 = vlaneseq
          %v1153 = vshrl.u32 %v1152, 7
          %v1154 = vsub.s32 %v1151, %v1153
          %v1155 = vrot.slane %v1133, %v1154
          %v1157 = vunpack.c.l.s4 1966171168
          %v1158 = vunpack.c.0.s8 %v1157
          %v1159 = vlaneseq
          %v1160 = vshrl.u32 %v1159, 7
          %v1161 = vsub.s32 %v1158, %v1160
          %v1162 = vrot.slane %v1134, %v1161
          %v1163 = vcombine.high %v1141, %v1141
          %v1164 = vcombine.high %v1148, %v1148
          %v1165 = vcombine.high %v1155, %v1155
          %v1166 = vcombine.high %v1162, %v1162
          %1175 = vst [vmem:[%s355 + $0x2] sm:$0x1] %v1141
          %1176 = vst [vmem:[%s355 + $0xa] sm:$0x1] %v1155
          %1177 = vst [vmem:[%s355 + $0x12] sm:$0x1] %v1163
          %1178 = vst [vmem:[%s355 + $0x1a] sm:$0x1] %v1165
          %1179 = vst [vmem:[%s355 + $0x22] sm:$0x1] %v1148
          %1180 = vst [vmem:[%s355 + $0x2a] sm:$0x1] %v1162
          %1181 = vst [vmem:[%s355 + $0x32] sm:$0x1] %v1164
          %1182 = vst [vmem:[%s355 + $0x3a] sm:$0x1] %v1166
          %1183 = vset.pattern.permute.xlu0 2
          %1184 = vperm.xlu0 %1183, %v682
          %v1185 = vpop.permute.xlu0 %1184
          %vm1186 = vcmp.eq.s32.totalorder %v1185, 1
          %v1187 = vsel %vm1186, %v1111, %v937
          %v1188 = vld [vmem:[%s328 + $0x3] sm:$0x1]
          %v1189 = vld [vmem:[%s328 + $0xb] sm:$0x1]
          %v1190 = vld [vmem:[%s328 + $0x13] sm:$0x1]
          %v1191 = vld [vmem:[%s328 + $0x1b] sm:$0x1]
          %v1192 = vld [vmem:[%s328 + $0x23] sm:$0x1]
          %v1193 = vld [vmem:[%s328 + $0x2b] sm:$0x1]
          %v1194 = vld [vmem:[%s328 + $0x33] sm:$0x1]
          %v1195 = vld [vmem:[%s328 + $0x3b] sm:$0x1]
          %v1204 = vrot.slane %v1189, 7
          %v1205 = vsel %vm445, %v1204, %v1188
          %v1206 = vrot.slane %v1190, 6
          %v1207 = vsel %vm448, %v1206, %v1205
          %v1208 = vrot.slane %v1191, 5
          %v1209 = vsel %vm451, %v1208, %v1207
          %v1210 = vrot.slane %v1192, 4
          %v1211 = vsel %vm454, %v1210, %v1209
          %v1212 = vrot.slane %v1193, 3
          %v1213 = vsel %vm457, %v1212, %v1211
          %v1214 = vrot.slane %v1194, 2
          %v1215 = vsel %vm460, %v1214, %v1213
          %v1216 = vrot.slane %v1195, 1
          %v1217 = vsel %vm463, %v1216, %v1215
          %v1218 = vsel %vm465, %v1217, 0
          %1220 = vmatprep.subr.mxu0 0.0
          %1221 = vmatpush1.msra.mxu0 0.0
          %1222 = vmatprep.subr.mxu0 0.0
          %1223 = vmatpush1.msra.mxu0 0.0
          %1224 = vmatprep.subr.mxu0 0.0
          %1225 = vmatpush1.msra.mxu0 0.0
          %1226 = vmatprep.subr.mxu0 0.0
          %1227 = vmatpush1.msra.mxu0 0.0
          %1228 = vmatprep.subr.mxu0 0.0
          %1229 = vmatpush1.msra.mxu0 0.0
          %1230 = vmatprep.subr.mxu0 0.0
          %1231 = vmatpush1.msra.mxu0 0.0
          %1232 = vmatprep.subr.mxu0 0.0
          %1233 = vmatpush1.msra.mxu0 0.0
          %1234 = vmatprep.subr.mxu0 0.0
          %1235 = vmatpush1.msra.mxu0 0.0
          %1236 = vmatprep.subr.mxu0 0.0
          %1237 = vmatpush1.msra.mxu0 0.0
          %1238 = vmatprep.subr.mxu0 0.0
          %1239 = vmatpush1.msra.mxu0 0.0
          %1240 = vmatprep.subr.mxu0 0.0
          %1241 = vmatpush1.msra.mxu0 0.0
          %1242 = vmatprep.subr.mxu0 0.0
          %1243 = vmatpush1.msra.mxu0 0.0
          %1244 = vmatprep.subr.mxu0 0.0
          %1245 = vmatpush1.msra.mxu0 %v402
          %1246 = vmatprep.subr.mxu0 0.0
          %1247 = vmatpush1.msra.mxu0 %v401
          %1248 = vmatprep.subr.mxu0 0.0
          %1249 = vmatpush1.msra.mxu0 %v400
          %1250 = vmatprep.subr.mxu0 0.0
          %1251 = vmatpush1.msra.mxu0 %v399
          %1252 = vmatprep.subr.mxu0 0.0
          %1253 = vmatpush2.msra.mxu0 0.0
          %1254 = vmatprep.subr.mxu0 0.0
          %1255 = vmatpush2.msra.mxu0 0.0
          %1256 = vmatprep.subr.mxu0 0.0
          %1257 = vmatpush2.msra.mxu0 0.0
          %1258 = vmatprep.subr.mxu0 0.0
          %1259 = vmatpush2.msra.mxu0 0.0
          %1260 = vmatprep.subr.mxu0 0.0
          %1261 = vmatpush2.msra.mxu0 0.0
          %1262 = vmatprep.subr.mxu0 0.0
          %1263 = vmatpush2.msra.mxu0 0.0
          %1264 = vmatprep.subr.mxu0 0.0
          %1265 = vmatpush2.msra.mxu0 0.0
          %1266 = vmatprep.subr.mxu0 0.0
          %1267 = vmatpush2.msra.mxu0 0.0
          %1268 = vmatprep.subr.mxu0 0.0
          %1269 = vmatpush2.msra.mxu0 0.0
          %1270 = vmatprep.subr.mxu0 0.0
          %1271 = vmatpush2.msra.mxu0 0.0
          %1272 = vmatprep.subr.mxu0 0.0
          %1273 = vmatpush2.msra.mxu0 0.0
          %1274 = vmatprep.subr.mxu0 0.0
          %1275 = vmatpush2.msra.mxu0 0.0
          %1276 = vmatprep.subr.mxu0 0.0
          %1277 = vmatpush2.msra.mxu0 0.0
          %1278 = vmatprep.subr.mxu0 0.0
          %1279 = vmatpush2.msra.mxu0 0.0
          %1280 = vmatprep.subr.mxu0 0.0
          %1281 = vmatpush2.msra.mxu0 0.0
          %1282 = vmatprep.subr.mxu0 0.0
          %1283 = vmatpush2.msra.mxu0 0.0
          %1284 = vmatprep.mubr.f32.mxu0 0.0
          %1285 = vmatmul.mubr.f32.gmra.mxu0 %v1218
          %v1286 = vpop.f32.mrf.mxu0
          %v1287 = vadd.f32 %v434, %v1286
          %v1288 = vpop.f32.mrf.mxu0
          %1289 = vdwg.mxu0
          %1290 = vmatprep.subr.mxu0 0.0
          %1291 = vmatpush1.msra.mxu0 %v418
          %1292 = vmatprep.subr.mxu0 0.0
          %1293 = vmatpush1.msra.mxu0 %v417
          %1294 = vmatprep.subr.mxu0 0.0
          %1295 = vmatpush1.msra.mxu0 %v416
          %1296 = vmatprep.subr.mxu0 0.0
          %1297 = vmatpush1.msra.mxu0 %v415
          %1298 = vmatprep.subr.mxu0 0.0
          %1299 = vmatpush1.msra.mxu0 %v414
          %1300 = vmatprep.subr.mxu0 0.0
          %1301 = vmatpush1.msra.mxu0 %v413
          %1302 = vmatprep.subr.mxu0 0.0
          %1303 = vmatpush1.msra.mxu0 %v412
          %1304 = vmatprep.subr.mxu0 0.0
          %1305 = vmatpush1.msra.mxu0 %v411
          %1306 = vmatprep.subr.mxu0 0.0
          %1307 = vmatpush1.msra.mxu0 %v410
          %1308 = vmatprep.subr.mxu0 0.0
          %1309 = vmatpush1.msra.mxu0 %v409
          %1310 = vmatprep.subr.mxu0 0.0
          %1311 = vmatpush1.msra.mxu0 %v408
          %1312 = vmatprep.subr.mxu0 0.0
          %1313 = vmatpush1.msra.mxu0 %v407
          %1314 = vmatprep.subr.mxu0 0.0
          %1315 = vmatpush1.msra.mxu0 %v406
          %1316 = vmatprep.subr.mxu0 0.0
          %1317 = vmatpush1.msra.mxu0 %v405
          %1318 = vmatprep.subr.mxu0 0.0
          %1319 = vmatpush1.msra.mxu0 %v404
          %1320 = vmatprep.subr.mxu0 0.0
          %1321 = vmatpush1.msra.mxu0 %v403
          %1322 = vmatprep.subr.mxu0 0.0
          %1323 = vmatpush2.msra.mxu0 0.0
          %1324 = vmatprep.subr.mxu0 0.0
          %1325 = vmatpush2.msra.mxu0 0.0
          %1326 = vmatprep.subr.mxu0 0.0
          %1327 = vmatpush2.msra.mxu0 0.0
          %1328 = vmatprep.subr.mxu0 0.0
          %1329 = vmatpush2.msra.mxu0 0.0
          %1330 = vmatprep.subr.mxu0 0.0
          %1331 = vmatpush2.msra.mxu0 0.0
          %1332 = vmatprep.subr.mxu0 0.0
          %1333 = vmatpush2.msra.mxu0 0.0
          %1334 = vmatprep.subr.mxu0 0.0
          %1335 = vmatpush2.msra.mxu0 0.0
          %1336 = vmatprep.subr.mxu0 0.0
          %1337 = vmatpush2.msra.mxu0 0.0
          %1338 = vmatprep.subr.mxu0 0.0
          %1339 = vmatpush2.msra.mxu0 0.0
          %1340 = vmatprep.subr.mxu0 0.0
          %1341 = vmatpush2.msra.mxu0 0.0
          %1342 = vmatprep.subr.mxu0 0.0
          %1343 = vmatpush2.msra.mxu0 0.0
          %1344 = vmatprep.subr.mxu0 0.0
          %1345 = vmatpush2.msra.mxu0 0.0
          %1346 = vmatprep.subr.mxu0 0.0
          %1347 = vmatpush2.msra.mxu0 0.0
          %1348 = vmatprep.subr.mxu0 0.0
          %1349 = vmatpush2.msra.mxu0 0.0
          %1350 = vmatprep.subr.mxu0 0.0
          %1351 = vmatpush2.msra.mxu0 0.0
          %1352 = vmatprep.subr.mxu0 0.0
          %1353 = vmatpush2.msra.mxu0 0.0
          %1354 = vmatprep.mubr.f32.mxu0 0.0
          %1355 = vmatmul.mubr.f32.gmra.mxu0 %v1111
          %v1356 = vpop.f32.mrf.mxu0
          %v1357 = vadd.f32 0.0, %v1356
          %v1358 = vpop.f32.mrf.mxu0
          %1359 = vdwg.mxu0
          %v1360 = vadd.f32 %v1287, %v1357
          %v1361 = vtanh.pop %v1360
          %1362 = vset.pattern.permute.xlu0 3
          %1363 = vperm.xlu0 %1362, %v610
          %v1364 = vpop.permute.xlu0 %1363
          %vm1365 = vcmp.eq.s32.totalorder %v1364, 1
          %v1366 = vsel %vm1365, %v1361, 0.0
          %v1368 = vcombine.high %v1366, %v1366
          %v1370 = vunpack.c.l.s4 1966171168
          %v1371 = vunpack.c.0.s8 %v1370
          %v1372 = vlaneseq
          %v1373 = vshrl.u32 %v1372, 7
          %v1374 = vsub.s32 %v1371, %v1373
          %v1375 = vrot.slane %v1366, %v1374
          %v1377 = vunpack.c.l.s4 1966171168
          %v1378 = vunpack.c.0.s8 %v1377
          %v1379 = vlaneseq
          %v1380 = vshrl.u32 %v1379, 7
          %v1381 = vsub.s32 %v1378, %v1380
          %v1382 = vrot.slane %v1368, %v1381
          %v1383 = vcombine.high %v1375, %v1375
          %v1384 = vcombine.high %v1382, %v1382
          %v1386 = vunpack.c.l.s4 1966171168
          %v1387 = vunpack.c.0.s8 %v1386
          %v1388 = vlaneseq
          %v1389 = vshrl.u32 %v1388, 7
          %v1390 = vsub.s32 %v1387, %v1389
          %v1391 = vrot.slane %v1375, %v1390
          %v1393 = vunpack.c.l.s4 1966171168
          %v1394 = vunpack.c.0.s8 %v1393
          %v1395 = vlaneseq
          %v1396 = vshrl.u32 %v1395, 7
          %v1397 = vsub.s32 %v1394, %v1396
          %v1398 = vrot.slane %v1382, %v1397
          %v1400 = vunpack.c.l.s4 1966171168
          %v1401 = vunpack.c.0.s8 %v1400
          %v1402 = vlaneseq
          %v1403 = vshrl.u32 %v1402, 7
          %v1404 = vsub.s32 %v1401, %v1403
          %v1405 = vrot.slane %v1383, %v1404
          %v1407 = vunpack.c.l.s4 1966171168
          %v1408 = vunpack.c.0.s8 %v1407
          %v1409 = vlaneseq
          %v1410 = vshrl.u32 %v1409, 7
          %v1411 = vsub.s32 %v1408, %v1410
          %v1412 = vrot.slane %v1384, %v1411
          %v1413 = vcombine.high %v1391, %v1391
          %v1414 = vcombine.high %v1398, %v1398
          %v1415 = vcombine.high %v1405, %v1405
          %v1416 = vcombine.high %v1412, %v1412
          %1425 = vst [vmem:[%s355 + $0x3] sm:$0x1] %v1391
          %1426 = vst [vmem:[%s355 + $0xb] sm:$0x1] %v1405
          %1427 = vst [vmem:[%s355 + $0x13] sm:$0x1] %v1413
          %1428 = vst [vmem:[%s355 + $0x1b] sm:$0x1] %v1415
          %1429 = vst [vmem:[%s355 + $0x23] sm:$0x1] %v1398
          %1430 = vst [vmem:[%s355 + $0x2b] sm:$0x1] %v1412
          %1431 = vst [vmem:[%s355 + $0x33] sm:$0x1] %v1414
          %1432 = vst [vmem:[%s355 + $0x3b] sm:$0x1] %v1416
          %1433 = vset.pattern.permute.xlu0 3
          %1434 = vperm.xlu0 %1433, %v682
          %v1435 = vpop.permute.xlu0 %1434
          %vm1436 = vcmp.eq.s32.totalorder %v1435, 1
          %v1437 = vsel %vm1436, %v1361, %v1187
          %v1438 = vld [vmem:[%s328 + $0x4] sm:$0x1]
          %v1439 = vld [vmem:[%s328 + $0xc] sm:$0x1]
          %v1440 = vld [vmem:[%s328 + $0x14] sm:$0x1]
          %v1441 = vld [vmem:[%s328 + $0x1c] sm:$0x1]
          %v1442 = vld [vmem:[%s328 + $0x24] sm:$0x1]
          %v1443 = vld [vmem:[%s328 + $0x2c] sm:$0x1]
          %v1444 = vld [vmem:[%s328 + $0x34] sm:$0x1]
          %v1445 = vld [vmem:[%s328 + $0x3c] sm:$0x1]
          %v1454 = vrot.slane %v1439, 7
          %v1455 = vsel %vm445, %v1454, %v1438
          %v1456 = vrot.slane %v1440, 6
          %v1457 = vsel %vm448, %v1456, %v1455
          %v1458 = vrot.slane %v1441, 5
          %v1459 = vsel %vm451, %v1458, %v1457
          %v1460 = vrot.slane %v1442, 4
          %v1461 = vsel %vm454, %v1460, %v1459
          %v1462 = vrot.slane %v1443, 3
          %v1463 = vsel %vm457, %v1462, %v1461
          %v1464 = vrot.slane %v1444, 2
          %v1465 = vsel %vm460, %v1464, %v1463
          %v1466 = vrot.slane %v1445, 1
          %v1467 = vsel %vm463, %v1466, %v1465
          %v1468 = vsel %vm465, %v1467, 0
          %1470 = vmatprep.subr.mxu0 0.0
          %1471 = vmatpush1.msra.mxu0 0.0
          %1472 = vmatprep.subr.mxu0 0.0
          %1473 = vmatpush1.msra.mxu0 0.0
          %1474 = vmatprep.subr.mxu0 0.0
          %1475 = vmatpush1.msra.mxu0 0.0
          %1476 = vmatprep.subr.mxu0 0.0
          %1477 = vmatpush1.msra.mxu0 0.0
          %1478 = vmatprep.subr.mxu0 0.0
          %1479 = vmatpush1.msra.mxu0 0.0
          %1480 = vmatprep.subr.mxu0 0.0
          %1481 = vmatpush1.msra.mxu0 0.0
          %1482 = vmatprep.subr.mxu0 0.0
          %1483 = vmatpush1.msra.mxu0 0.0
          %1484 = vmatprep.subr.mxu0 0.0
          %1485 = vmatpush1.msra.mxu0 0.0
          %1486 = vmatprep.subr.mxu0 0.0
          %1487 = vmatpush1.msra.mxu0 0.0
          %1488 = vmatprep.subr.mxu0 0.0
          %1489 = vmatpush1.msra.mxu0 0.0
          %1490 = vmatprep.subr.mxu0 0.0
          %1491 = vmatpush1.msra.mxu0 0.0
          %1492 = vmatprep.subr.mxu0 0.0
          %1493 = vmatpush1.msra.mxu0 0.0
          %1494 = vmatprep.subr.mxu0 0.0
          %1495 = vmatpush1.msra.mxu0 %v402
          %1496 = vmatprep.subr.mxu0 0.0
          %1497 = vmatpush1.msra.mxu0 %v401
          %1498 = vmatprep.subr.mxu0 0.0
          %1499 = vmatpush1.msra.mxu0 %v400
          %1500 = vmatprep.subr.mxu0 0.0
          %1501 = vmatpush1.msra.mxu0 %v399
          %1502 = vmatprep.subr.mxu0 0.0
          %1503 = vmatpush2.msra.mxu0 0.0
          %1504 = vmatprep.subr.mxu0 0.0
          %1505 = vmatpush2.msra.mxu0 0.0
          %1506 = vmatprep.subr.mxu0 0.0
          %1507 = vmatpush2.msra.mxu0 0.0
          %1508 = vmatprep.subr.mxu0 0.0
          %1509 = vmatpush2.msra.mxu0 0.0
          %1510 = vmatprep.subr.mxu0 0.0
          %1511 = vmatpush2.msra.mxu0 0.0
          %1512 = vmatprep.subr.mxu0 0.0
          %1513 = vmatpush2.msra.mxu0 0.0
          %1514 = vmatprep.subr.mxu0 0.0
          %1515 = vmatpush2.msra.mxu0 0.0
          %1516 = vmatprep.subr.mxu0 0.0
          %1517 = vmatpush2.msra.mxu0 0.0
          %1518 = vmatprep.subr.mxu0 0.0
          %1519 = vmatpush2.msra.mxu0 0.0
          %1520 = vmatprep.subr.mxu0 0.0
          %1521 = vmatpush2.msra.mxu0 0.0
          %1522 = vmatprep.subr.mxu0 0.0
          %1523 = vmatpush2.msra.mxu0 0.0
          %1524 = vmatprep.subr.mxu0 0.0
          %1525 = vmatpush2.msra.mxu0 0.0
          %1526 = vmatprep.subr.mxu0 0.0
          %1527 = vmatpush2.msra.mxu0 0.0
          %1528 = vmatprep.subr.mxu0 0.0
          %1529 = vmatpush2.msra.mxu0 0.0
          %1530 = vmatprep.subr.mxu0 0.0
          %1531 = vmatpush2.msra.mxu0 0.0
          %1532 = vmatprep.subr.mxu0 0.0
          %1533 = vmatpush2.msra.mxu0 0.0
          %1534 = vmatprep.mubr.f32.mxu0 0.0
          %1535 = vmatmul.mubr.f32.gmra.mxu0 %v1468
          %v1536 = vpop.f32.mrf.mxu0
          %v1537 = vadd.f32 %v434, %v1536
          %v1538 = vpop.f32.mrf.mxu0
          %1539 = vdwg.mxu0
          %1540 = vmatprep.subr.mxu0 0.0
          %1541 = vmatpush1.msra.mxu0 %v418
          %1542 = vmatprep.subr.mxu0 0.0
          %1543 = vmatpush1.msra.mxu0 %v417
          %1544 = vmatprep.subr.mxu0 0.0
          %1545 = vmatpush1.msra.mxu0 %v416
          %1546 = vmatprep.subr.mxu0 0.0
          %1547 = vmatpush1.msra.mxu0 %v415
          %1548 = vmatprep.subr.mxu0 0.0
          %1549 = vmatpush1.msra.mxu0 %v414
          %1550 = vmatprep.subr.mxu0 0.0
          %1551 = vmatpush1.msra.mxu0 %v413
          %1552 = vmatprep.subr.mxu0 0.0
          %1553 = vmatpush1.msra.mxu0 %v412
          %1554 = vmatprep.subr.mxu0 0.0
          %1555 = vmatpush1.msra.mxu0 %v411
          %1556 = vmatprep.subr.mxu0 0.0
          %1557 = vmatpush1.msra.mxu0 %v410
          %1558 = vmatprep.subr.mxu0 0.0
          %1559 = vmatpush1.msra.mxu0 %v409
          %1560 = vmatprep.subr.mxu0 0.0
          %1561 = vmatpush1.msra.mxu0 %v408
          %1562 = vmatprep.subr.mxu0 0.0
          %1563 = vmatpush1.msra.mxu0 %v407
          %1564 = vmatprep.subr.mxu0 0.0
          %1565 = vmatpush1.msra.mxu0 %v406
          %1566 = vmatprep.subr.mxu0 0.0
          %1567 = vmatpush1.msra.mxu0 %v405
          %1568 = vmatprep.subr.mxu0 0.0
          %1569 = vmatpush1.msra.mxu0 %v404
          %1570 = vmatprep.subr.mxu0 0.0
          %1571 = vmatpush1.msra.mxu0 %v403
          %1572 = vmatprep.subr.mxu0 0.0
          %1573 = vmatpush2.msra.mxu0 0.0
          %1574 = vmatprep.subr.mxu0 0.0
          %1575 = vmatpush2.msra.mxu0 0.0
          %1576 = vmatprep.subr.mxu0 0.0
          %1577 = vmatpush2.msra.mxu0 0.0
          %1578 = vmatprep.subr.mxu0 0.0
          %1579 = vmatpush2.msra.mxu0 0.0
          %1580 = vmatprep.subr.mxu0 0.0
          %1581 = vmatpush2.msra.mxu0 0.0
          %1582 = vmatprep.subr.mxu0 0.0
          %1583 = vmatpush2.msra.mxu0 0.0
          %1584 = vmatprep.subr.mxu0 0.0
          %1585 = vmatpush2.msra.mxu0 0.0
          %1586 = vmatprep.subr.mxu0 0.0
          %1587 = vmatpush2.msra.mxu0 0.0
          %1588 = vmatprep.subr.mxu0 0.0
          %1589 = vmatpush2.msra.mxu0 0.0
          %1590 = vmatprep.subr.mxu0 0.0
          %1591 = vmatpush2.msra.mxu0 0.0
          %1592 = vmatprep.subr.mxu0 0.0
          %1593 = vmatpush2.msra.mxu0 0.0
          %1594 = vmatprep.subr.mxu0 0.0
          %1595 = vmatpush2.msra.mxu0 0.0
          %1596 = vmatprep.subr.mxu0 0.0
          %1597 = vmatpush2.msra.mxu0 0.0
          %1598 = vmatprep.subr.mxu0 0.0
          %1599 = vmatpush2.msra.mxu0 0.0
          %1600 = vmatprep.subr.mxu0 0.0
          %1601 = vmatpush2.msra.mxu0 0.0
          %1602 = vmatprep.subr.mxu0 0.0
          %1603 = vmatpush2.msra.mxu0 0.0
          %1604 = vmatprep.mubr.f32.mxu0 0.0
          %1605 = vmatmul.mubr.f32.gmra.mxu0 %v1361
          %v1606 = vpop.f32.mrf.mxu0
          %v1607 = vadd.f32 0.0, %v1606
          %v1608 = vpop.f32.mrf.mxu0
          %1609 = vdwg.mxu0
          %v1610 = vadd.f32 %v1537, %v1607
          %v1611 = vtanh.pop %v1610
          %1612 = vset.pattern.permute.xlu0 4
          %1613 = vperm.xlu0 %1612, %v610
          %v1614 = vpop.permute.xlu0 %1613
          %vm1615 = vcmp.eq.s32.totalorder %v1614, 1
          %v1616 = vsel %vm1615, %v1611, 0.0
          %v1618 = vcombine.high %v1616, %v1616
          %v1620 = vunpack.c.l.s4 1966171168
          %v1621 = vunpack.c.0.s8 %v1620
          %v1622 = vlaneseq
          %v1623 = vshrl.u32 %v1622, 7
          %v1624 = vsub.s32 %v1621, %v1623
          %v1625 = vrot.slane %v1616, %v1624
          %v1627 = vunpack.c.l.s4 1966171168
          %v1628 = vunpack.c.0.s8 %v1627
          %v1629 = vlaneseq
          %v1630 = vshrl.u32 %v1629, 7
          %v1631 = vsub.s32 %v1628, %v1630
          %v1632 = vrot.slane %v1618, %v1631
          %v1633 = vcombine.high %v1625, %v1625
          %v1634 = vcombine.high %v1632, %v1632
          %v1636 = vunpack.c.l.s4 1966171168
          %v1637 = vunpack.c.0.s8 %v1636
          %v1638 = vlaneseq
          %v1639 = vshrl.u32 %v1638, 7
          %v1640 = vsub.s32 %v1637, %v1639
          %v1641 = vrot.slane %v1625, %v1640
          %v1643 = vunpack.c.l.s4 1966171168
          %v1644 = vunpack.c.0.s8 %v1643
          %v1645 = vlaneseq
          %v1646 = vshrl.u32 %v1645, 7
          %v1647 = vsub.s32 %v1644, %v1646
          %v1648 = vrot.slane %v1632, %v1647
          %v1650 = vunpack.c.l.s4 1966171168
          %v1651 = vunpack.c.0.s8 %v1650
          %v1652 = vlaneseq
          %v1653 = vshrl.u32 %v1652, 7
          %v1654 = vsub.s32 %v1651, %v1653
          %v1655 = vrot.slane %v1633, %v1654
          %v1657 = vunpack.c.l.s4 1966171168
          %v1658 = vunpack.c.0.s8 %v1657
          %v1659 = vlaneseq
          %v1660 = vshrl.u32 %v1659, 7
          %v1661 = vsub.s32 %v1658, %v1660
          %v1662 = vrot.slane %v1634, %v1661
          %v1663 = vcombine.high %v1641, %v1641
          %v1664 = vcombine.high %v1648, %v1648
          %v1665 = vcombine.high %v1655, %v1655
          %v1666 = vcombine.high %v1662, %v1662
          %1675 = vst [vmem:[%s355 + $0x4] sm:$0x1] %v1641
          %1676 = vst [vmem:[%s355 + $0xc] sm:$0x1] %v1655
          %1677 = vst [vmem:[%s355 + $0x14] sm:$0x1] %v1663
          %1678 = vst [vmem:[%s355 + $0x1c] sm:$0x1] %v1665
          %1679 = vst [vmem:[%s355 + $0x24] sm:$0x1] %v1648
          %1680 = vst [vmem:[%s355 + $0x2c] sm:$0x1] %v1662
          %1681 = vst [vmem:[%s355 + $0x34] sm:$0x1] %v1664
          %1682 = vst [vmem:[%s355 + $0x3c] sm:$0x1] %v1666
          %1683 = vset.pattern.permute.xlu0 4
          %1684 = vperm.xlu0 %1683, %v682
          %v1685 = vpop.permute.xlu0 %1684
          %vm1686 = vcmp.eq.s32.totalorder %v1685, 1
          %v1687 = vsel %vm1686, %v1611, %v1437
          %v1688 = vld [vmem:[%s328 + $0x5] sm:$0x1]
          %v1689 = vld [vmem:[%s328 + $0xd] sm:$0x1]
          %v1690 = vld [vmem:[%s328 + $0x15] sm:$0x1]
          %v1691 = vld [vmem:[%s328 + $0x1d] sm:$0x1]
          %v1692 = vld [vmem:[%s328 + $0x25] sm:$0x1]
          %v1693 = vld [vmem:[%s328 + $0x2d] sm:$0x1]
          %v1694 = vld [vmem:[%s328 + $0x35] sm:$0x1]
          %v1695 = vld [vmem:[%s328 + $0x3d] sm:$0x1]
          %v1704 = vrot.slane %v1689, 7
          %v1705 = vsel %vm445, %v1704, %v1688
          %v1706 = vrot.slane %v1690, 6
          %v1707 = vsel %vm448, %v1706, %v1705
          %v1708 = vrot.slane %v1691, 5
          %v1709 = vsel %vm451, %v1708, %v1707
          %v1710 = vrot.slane %v1692, 4
          %v1711 = vsel %vm454, %v1710, %v1709
          %v1712 = vrot.slane %v1693, 3
          %v1713 = vsel %vm457, %v1712, %v1711
          %v1714 = vrot.slane %v1694, 2
          %v1715 = vsel %vm460, %v1714, %v1713
          %v1716 = vrot.slane %v1695, 1
          %v1717 = vsel %vm463, %v1716, %v1715
          %v1718 = vsel %vm465, %v1717, 0
          %1720 = vmatprep.subr.mxu0 0.0
          %1721 = vmatpush1.msra.mxu0 0.0
          %1722 = vmatprep.subr.mxu0 0.0
          %1723 = vmatpush1.msra.mxu0 0.0
          %1724 = vmatprep.subr.mxu0 0.0
          %1725 = vmatpush1.msra.mxu0 0.0
          %1726 = vmatprep.subr.mxu0 0.0
          %1727 = vmatpush1.msra.mxu0 0.0
          %1728 = vmatprep.subr.mxu0 0.0
          %1729 = vmatpush1.msra.mxu0 0.0
          %1730 = vmatprep.subr.mxu0 0.0
          %1731 = vmatpush1.msra.mxu0 0.0
          %1732 = vmatprep.subr.mxu0 0.0
          %1733 = vmatpush1.msra.mxu0 0.0
          %1734 = vmatprep.subr.mxu0 0.0
          %1735 = vmatpush1.msra.mxu0 0.0
          %1736 = vmatprep.subr.mxu0 0.0
          %1737 = vmatpush1.msra.mxu0 0.0
          %1738 = vmatprep.subr.mxu0 0.0
          %1739 = vmatpush1.msra.mxu0 0.0
          %1740 = vmatprep.subr.mxu0 0.0
          %1741 = vmatpush1.msra.mxu0 0.0
          %1742 = vmatprep.subr.mxu0 0.0
          %1743 = vmatpush1.msra.mxu0 0.0
          %1744 = vmatprep.subr.mxu0 0.0
          %1745 = vmatpush1.msra.mxu0 %v402
          %1746 = vmatprep.subr.mxu0 0.0
          %1747 = vmatpush1.msra.mxu0 %v401
          %1748 = vmatprep.subr.mxu0 0.0
          %1749 = vmatpush1.msra.mxu0 %v400
          %1750 = vmatprep.subr.mxu0 0.0
          %1751 = vmatpush1.msra.mxu0 %v399
          %1752 = vmatprep.subr.mxu0 0.0
          %1753 = vmatpush2.msra.mxu0 0.0
          %1754 = vmatprep.subr.mxu0 0.0
          %1755 = vmatpush2.msra.mxu0 0.0
          %1756 = vmatprep.subr.mxu0 0.0
          %1757 = vmatpush2.msra.mxu0 0.0
          %1758 = vmatprep.subr.mxu0 0.0
          %1759 = vmatpush2.msra.mxu0 0.0
          %1760 = vmatprep.subr.mxu0 0.0
          %1761 = vmatpush2.msra.mxu0 0.0
          %1762 = vmatprep.subr.mxu0 0.0
          %1763 = vmatpush2.msra.mxu0 0.0
          %1764 = vmatprep.subr.mxu0 0.0
          %1765 = vmatpush2.msra.mxu0 0.0
          %1766 = vmatprep.subr.mxu0 0.0
          %1767 = vmatpush2.msra.mxu0 0.0
          %1768 = vmatprep.subr.mxu0 0.0
          %1769 = vmatpush2.msra.mxu0 0.0
          %1770 = vmatprep.subr.mxu0 0.0
          %1771 = vmatpush2.msra.mxu0 0.0
          %1772 = vmatprep.subr.mxu0 0.0
          %1773 = vmatpush2.msra.mxu0 0.0
          %1774 = vmatprep.subr.mxu0 0.0
          %1775 = vmatpush2.msra.mxu0 0.0
          %1776 = vmatprep.subr.mxu0 0.0
          %1777 = vmatpush2.msra.mxu0 0.0
          %1778 = vmatprep.subr.mxu0 0.0
          %1779 = vmatpush2.msra.mxu0 0.0
          %1780 = vmatprep.subr.mxu0 0.0
          %1781 = vmatpush2.msra.mxu0 0.0
          %1782 = vmatprep.subr.mxu0 0.0
          %1783 = vmatpush2.msra.mxu0 0.0
          %1784 = vmatprep.mubr.f32.mxu0 0.0
          %1785 = vmatmul.mubr.f32.gmra.mxu0 %v1718
          %v1786 = vpop.f32.mrf.mxu0
          %v1787 = vadd.f32 %v434, %v1786
          %v1788 = vpop.f32.mrf.mxu0
          %1789 = vdwg.mxu0
          %1790 = vmatprep.subr.mxu0 0.0
          %1791 = vmatpush1.msra.mxu0 %v418
          %1792 = vmatprep.subr.mxu0 0.0
          %1793 = vmatpush1.msra.mxu0 %v417
          %1794 = vmatprep.subr.mxu0 0.0
          %1795 = vmatpush1.msra.mxu0 %v416
          %1796 = vmatprep.subr.mxu0 0.0
          %1797 = vmatpush1.msra.mxu0 %v415
          %1798 = vmatprep.subr.mxu0 0.0
          %1799 = vmatpush1.msra.mxu0 %v414
          %1800 = vmatprep.subr.mxu0 0.0
          %1801 = vmatpush1.msra.mxu0 %v413
          %1802 = vmatprep.subr.mxu0 0.0
          %1803 = vmatpush1.msra.mxu0 %v412
          %1804 = vmatprep.subr.mxu0 0.0
          %1805 = vmatpush1.msra.mxu0 %v411
          %1806 = vmatprep.subr.mxu0 0.0
          %1807 = vmatpush1.msra.mxu0 %v410
          %1808 = vmatprep.subr.mxu0 0.0
          %1809 = vmatpush1.msra.mxu0 %v409
          %1810 = vmatprep.subr.mxu0 0.0
          %1811 = vmatpush1.msra.mxu0 %v408
          %1812 = vmatprep.subr.mxu0 0.0
          %1813 = vmatpush1.msra.mxu0 %v407
          %1814 = vmatprep.subr.mxu0 0.0
          %1815 = vmatpush1.msra.mxu0 %v406
          %1816 = vmatprep.subr.mxu0 0.0
          %1817 = vmatpush1.msra.mxu0 %v405
          %1818 = vmatprep.subr.mxu0 0.0
          %1819 = vmatpush1.msra.mxu0 %v404
          %1820 = vmatprep.subr.mxu0 0.0
          %1821 = vmatpush1.msra.mxu0 %v403
          %1822 = vmatprep.subr.mxu0 0.0
          %1823 = vmatpush2.msra.mxu0 0.0
          %1824 = vmatprep.subr.mxu0 0.0
          %1825 = vmatpush2.msra.mxu0 0.0
          %1826 = vmatprep.subr.mxu0 0.0
          %1827 = vmatpush2.msra.mxu0 0.0
          %1828 = vmatprep.subr.mxu0 0.0
          %1829 = vmatpush2.msra.mxu0 0.0
          %1830 = vmatprep.subr.mxu0 0.0
          %1831 = vmatpush2.msra.mxu0 0.0
          %1832 = vmatprep.subr.mxu0 0.0
          %1833 = vmatpush2.msra.mxu0 0.0
          %1834 = vmatprep.subr.mxu0 0.0
          %1835 = vmatpush2.msra.mxu0 0.0
          %1836 = vmatprep.subr.mxu0 0.0
          %1837 = vmatpush2.msra.mxu0 0.0
          %1838 = vmatprep.subr.mxu0 0.0
          %1839 = vmatpush2.msra.mxu0 0.0
          %1840 = vmatprep.subr.mxu0 0.0
          %1841 = vmatpush2.msra.mxu0 0.0
          %1842 = vmatprep.subr.mxu0 0.0
          %1843 = vmatpush2.msra.mxu0 0.0
          %1844 = vmatprep.subr.mxu0 0.0
          %1845 = vmatpush2.msra.mxu0 0.0
          %1846 = vmatprep.subr.mxu0 0.0
          %1847 = vmatpush2.msra.mxu0 0.0
          %1848 = vmatprep.subr.mxu0 0.0
          %1849 = vmatpush2.msra.mxu0 0.0
          %1850 = vmatprep.subr.mxu0 0.0
          %1851 = vmatpush2.msra.mxu0 0.0
          %1852 = vmatprep.subr.mxu0 0.0
          %1853 = vmatpush2.msra.mxu0 0.0
          %1854 = vmatprep.mubr.f32.mxu0 0.0
          %1855 = vmatmul.mubr.f32.gmra.mxu0 %v1611
          %v1856 = vpop.f32.mrf.mxu0
          %v1857 = vadd.f32 0.0, %v1856
          %v1858 = vpop.f32.mrf.mxu0
          %1859 = vdwg.mxu0
          %v1860 = vadd.f32 %v1787, %v1857
          %v1861 = vtanh.pop %v1860
          %1862 = vset.pattern.permute.xlu0 5
          %1863 = vperm.xlu0 %1862, %v610
          %v1864 = vpop.permute.xlu0 %1863
          %vm1865 = vcmp.eq.s32.totalorder %v1864, 1
          %v1866 = vsel %vm1865, %v1861, 0.0
          %v1868 = vcombine.high %v1866, %v1866
          %v1870 = vunpack.c.l.s4 1966171168
          %v1871 = vunpack.c.0.s8 %v1870
          %v1872 = vlaneseq
          %v1873 = vshrl.u32 %v1872, 7
          %v1874 = vsub.s32 %v1871, %v1873
          %v1875 = vrot.slane %v1866, %v1874
          %v1877 = vunpack.c.l.s4 1966171168
          %v1878 = vunpack.c.0.s8 %v1877
          %v1879 = vlaneseq
          %v1880 = vshrl.u32 %v1879, 7
          %v1881 = vsub.s32 %v1878, %v1880
          %v1882 = vrot.slane %v1868, %v1881
          %v1883 = vcombine.high %v1875, %v1875
          %v1884 = vcombine.high %v1882, %v1882
          %v1886 = vunpack.c.l.s4 1966171168
          %v1887 = vunpack.c.0.s8 %v1886
          %v1888 = vlaneseq
          %v1889 = vshrl.u32 %v1888, 7
          %v1890 = vsub.s32 %v1887, %v1889
          %v1891 = vrot.slane %v1875, %v1890
          %v1893 = vunpack.c.l.s4 1966171168
          %v1894 = vunpack.c.0.s8 %v1893
          %v1895 = vlaneseq
          %v1896 = vshrl.u32 %v1895, 7
          %v1897 = vsub.s32 %v1894, %v1896
          %v1898 = vrot.slane %v1882, %v1897
          %v1900 = vunpack.c.l.s4 1966171168
          %v1901 = vunpack.c.0.s8 %v1900
          %v1902 = vlaneseq
          %v1903 = vshrl.u32 %v1902, 7
          %v1904 = vsub.s32 %v1901, %v1903
          %v1905 = vrot.slane %v1883, %v1904
          %v1907 = vunpack.c.l.s4 1966171168
          %v1908 = vunpack.c.0.s8 %v1907
          %v1909 = vlaneseq
          %v1910 = vshrl.u32 %v1909, 7
          %v1911 = vsub.s32 %v1908, %v1910
          %v1912 = vrot.slane %v1884, %v1911
          %v1913 = vcombine.high %v1891, %v1891
          %v1914 = vcombine.high %v1898, %v1898
          %v1915 = vcombine.high %v1905, %v1905
          %v1916 = vcombine.high %v1912, %v1912
          %1925 = vst [vmem:[%s355 + $0x5] sm:$0x1] %v1891
          %1926 = vst [vmem:[%s355 + $0xd] sm:$0x1] %v1905
          %1927 = vst [vmem:[%s355 + $0x15] sm:$0x1] %v1913
          %1928 = vst [vmem:[%s355 + $0x1d] sm:$0x1] %v1915
          %1929 = vst [vmem:[%s355 + $0x25] sm:$0x1] %v1898
          %1930 = vst [vmem:[%s355 + $0x2d] sm:$0x1] %v1912
          %1931 = vst [vmem:[%s355 + $0x35] sm:$0x1] %v1914
          %1932 = vst [vmem:[%s355 + $0x3d] sm:$0x1] %v1916
          %1933 = vset.pattern.permute.xlu0 5
          %1934 = vperm.xlu0 %1933, %v682
          %v1935 = vpop.permute.xlu0 %1934
          %vm1936 = vcmp.eq.s32.totalorder %v1935, 1
          %v1937 = vsel %vm1936, %v1861, %v1687
          %v1938 = vld [vmem:[%s328 + $0x6] sm:$0x1]
          %v1939 = vld [vmem:[%s328 + $0xe] sm:$0x1]
          %v1940 = vld [vmem:[%s328 + $0x16] sm:$0x1]
          %v1941 = vld [vmem:[%s328 + $0x1e] sm:$0x1]
          %v1942 = vld [vmem:[%s328 + $0x26] sm:$0x1]
          %v1943 = vld [vmem:[%s328 + $0x2e] sm:$0x1]
          %v1944 = vld [vmem:[%s328 + $0x36] sm:$0x1]
          %v1945 = vld [vmem:[%s328 + $0x3e] sm:$0x1]
          %v1954 = vrot.slane %v1939, 7
          %v1955 = vsel %vm445, %v1954, %v1938
          %v1956 = vrot.slane %v1940, 6
          %v1957 = vsel %vm448, %v1956, %v1955
          %v1958 = vrot.slane %v1941, 5
          %v1959 = vsel %vm451, %v1958, %v1957
          %v1960 = vrot.slane %v1942, 4
          %v1961 = vsel %vm454, %v1960, %v1959
          %v1962 = vrot.slane %v1943, 3
          %v1963 = vsel %vm457, %v1962, %v1961
          %v1964 = vrot.slane %v1944, 2
          %v1965 = vsel %vm460, %v1964, %v1963
          %v1966 = vrot.slane %v1945, 1
          %v1967 = vsel %vm463, %v1966, %v1965
          %v1968 = vsel %vm465, %v1967, 0
          %1970 = vmatprep.subr.mxu0 0.0
          %1971 = vmatpush1.msra.mxu0 0.0
          %1972 = vmatprep.subr.mxu0 0.0
          %1973 = vmatpush1.msra.mxu0 0.0
          %1974 = vmatprep.subr.mxu0 0.0
          %1975 = vmatpush1.msra.mxu0 0.0
          %1976 = vmatprep.subr.mxu0 0.0
          %1977 = vmatpush1.msra.mxu0 0.0
          %1978 = vmatprep.subr.mxu0 0.0
          %1979 = vmatpush1.msra.mxu0 0.0
          %1980 = vmatprep.subr.mxu0 0.0
          %1981 = vmatpush1.msra.mxu0 0.0
          %1982 = vmatprep.subr.mxu0 0.0
          %1983 = vmatpush1.msra.mxu0 0.0
          %1984 = vmatprep.subr.mxu0 0.0
          %1985 = vmatpush1.msra.mxu0 0.0
          %1986 = vmatprep.subr.mxu0 0.0
          %1987 = vmatpush1.msra.mxu0 0.0
          %1988 = vmatprep.subr.mxu0 0.0
          %1989 = vmatpush1.msra.mxu0 0.0
          %1990 = vmatprep.subr.mxu0 0.0
          %1991 = vmatpush1.msra.mxu0 0.0
          %1992 = vmatprep.subr.mxu0 0.0
          %1993 = vmatpush1.msra.mxu0 0.0
          %1994 = vmatprep.subr.mxu0 0.0
          %1995 = vmatpush1.msra.mxu0 %v402
          %1996 = vmatprep.subr.mxu0 0.0
          %1997 = vmatpush1.msra.mxu0 %v401
          %1998 = vmatprep.subr.mxu0 0.0
          %1999 = vmatpush1.msra.mxu0 %v400
          %2000 = vmatprep.subr.mxu0 0.0
          %2001 = vmatpush1.msra.mxu0 %v399
          %2002 = vmatprep.subr.mxu0 0.0
          %2003 = vmatpush2.msra.mxu0 0.0
          %2004 = vmatprep.subr.mxu0 0.0
          %2005 = vmatpush2.msra.mxu0 0.0
          %2006 = vmatprep.subr.mxu0 0.0
          %2007 = vmatpush2.msra.mxu0 0.0
          %2008 = vmatprep.subr.mxu0 0.0
          %2009 = vmatpush2.msra.mxu0 0.0
          %2010 = vmatprep.subr.mxu0 0.0
          %2011 = vmatpush2.msra.mxu0 0.0
          %2012 = vmatprep.subr.mxu0 0.0
          %2013 = vmatpush2.msra.mxu0 0.0
          %2014 = vmatprep.subr.mxu0 0.0
          %2015 = vmatpush2.msra.mxu0 0.0
          %2016 = vmatprep.subr.mxu0 0.0
          %2017 = vmatpush2.msra.mxu0 0.0
          %2018 = vmatprep.subr.mxu0 0.0
          %2019 = vmatpush2.msra.mxu0 0.0
          %2020 = vmatprep.subr.mxu0 0.0
          %2021 = vmatpush2.msra.mxu0 0.0
          %2022 = vmatprep.subr.mxu0 0.0
          %2023 = vmatpush2.msra.mxu0 0.0
          %2024 = vmatprep.subr.mxu0 0.0
          %2025 = vmatpush2.msra.mxu0 0.0
          %2026 = vmatprep.subr.mxu0 0.0
          %2027 = vmatpush2.msra.mxu0 0.0
          %2028 = vmatprep.subr.mxu0 0.0
          %2029 = vmatpush2.msra.mxu0 0.0
          %2030 = vmatprep.subr.mxu0 0.0
          %2031 = vmatpush2.msra.mxu0 0.0
          %2032 = vmatprep.subr.mxu0 0.0
          %2033 = vmatpush2.msra.mxu0 0.0
          %2034 = vmatprep.mubr.f32.mxu0 0.0
          %2035 = vmatmul.mubr.f32.gmra.mxu0 %v1968
          %v2036 = vpop.f32.mrf.mxu0
          %v2037 = vadd.f32 %v434, %v2036
          %v2038 = vpop.f32.mrf.mxu0
          %2039 = vdwg.mxu0
          %2040 = vmatprep.subr.mxu0 0.0
          %2041 = vmatpush1.msra.mxu0 %v418
          %2042 = vmatprep.subr.mxu0 0.0
          %2043 = vmatpush1.msra.mxu0 %v417
          %2044 = vmatprep.subr.mxu0 0.0
          %2045 = vmatpush1.msra.mxu0 %v416
          %2046 = vmatprep.subr.mxu0 0.0
          %2047 = vmatpush1.msra.mxu0 %v415
          %2048 = vmatprep.subr.mxu0 0.0
          %2049 = vmatpush1.msra.mxu0 %v414
          %2050 = vmatprep.subr.mxu0 0.0
          %2051 = vmatpush1.msra.mxu0 %v413
          %2052 = vmatprep.subr.mxu0 0.0
          %2053 = vmatpush1.msra.mxu0 %v412
          %2054 = vmatprep.subr.mxu0 0.0
          %2055 = vmatpush1.msra.mxu0 %v411
          %2056 = vmatprep.subr.mxu0 0.0
          %2057 = vmatpush1.msra.mxu0 %v410
          %2058 = vmatprep.subr.mxu0 0.0
          %2059 = vmatpush1.msra.mxu0 %v409
          %2060 = vmatprep.subr.mxu0 0.0
          %2061 = vmatpush1.msra.mxu0 %v408
          %2062 = vmatprep.subr.mxu0 0.0
          %2063 = vmatpush1.msra.mxu0 %v407
          %2064 = vmatprep.subr.mxu0 0.0
          %2065 = vmatpush1.msra.mxu0 %v406
          %2066 = vmatprep.subr.mxu0 0.0
          %2067 = vmatpush1.msra.mxu0 %v405
          %2068 = vmatprep.subr.mxu0 0.0
          %2069 = vmatpush1.msra.mxu0 %v404
          %2070 = vmatprep.subr.mxu0 0.0
          %2071 = vmatpush1.msra.mxu0 %v403
          %2072 = vmatprep.subr.mxu0 0.0
          %2073 = vmatpush2.msra.mxu0 0.0
          %2074 = vmatprep.subr.mxu0 0.0
          %2075 = vmatpush2.msra.mxu0 0.0
          %2076 = vmatprep.subr.mxu0 0.0
          %2077 = vmatpush2.msra.mxu0 0.0
          %2078 = vmatprep.subr.mxu0 0.0
          %2079 = vmatpush2.msra.mxu0 0.0
          %2080 = vmatprep.subr.mxu0 0.0
          %2081 = vmatpush2.msra.mxu0 0.0
          %2082 = vmatprep.subr.mxu0 0.0
          %2083 = vmatpush2.msra.mxu0 0.0
          %2084 = vmatprep.subr.mxu0 0.0
          %2085 = vmatpush2.msra.mxu0 0.0
          %2086 = vmatprep.subr.mxu0 0.0
          %2087 = vmatpush2.msra.mxu0 0.0
          %2088 = vmatprep.subr.mxu0 0.0
          %2089 = vmatpush2.msra.mxu0 0.0
          %2090 = vmatprep.subr.mxu0 0.0
          %2091 = vmatpush2.msra.mxu0 0.0
          %2092 = vmatprep.subr.mxu0 0.0
          %2093 = vmatpush2.msra.mxu0 0.0
          %2094 = vmatprep.subr.mxu0 0.0
          %2095 = vmatpush2.msra.mxu0 0.0
          %2096 = vmatprep.subr.mxu0 0.0
          %2097 = vmatpush2.msra.mxu0 0.0
          %2098 = vmatprep.subr.mxu0 0.0
          %2099 = vmatpush2.msra.mxu0 0.0
          %2100 = vmatprep.subr.mxu0 0.0
          %2101 = vmatpush2.msra.mxu0 0.0
          %2102 = vmatprep.subr.mxu0 0.0
          %2103 = vmatpush2.msra.mxu0 0.0
          %2104 = vmatprep.mubr.f32.mxu0 0.0
          %2105 = vmatmul.mubr.f32.gmra.mxu0 %v1861
          %v2106 = vpop.f32.mrf.mxu0
          %v2107 = vadd.f32 0.0, %v2106
          %v2108 = vpop.f32.mrf.mxu0
          %2109 = vdwg.mxu0
          %v2110 = vadd.f32 %v2037, %v2107
          %v2111 = vtanh.pop %v2110
          %2112 = vset.pattern.permute.xlu0 6
          %2113 = vperm.xlu0 %2112, %v610
          %v2114 = vpop.permute.xlu0 %2113
          %vm2115 = vcmp.eq.s32.totalorder %v2114, 1
          %v2116 = vsel %vm2115, %v2111, 0.0
          %v2118 = vcombine.high %v2116, %v2116
          %v2120 = vunpack.c.l.s4 1966171168
          %v2121 = vunpack.c.0.s8 %v2120
          %v2122 = vlaneseq
          %v2123 = vshrl.u32 %v2122, 7
          %v2124 = vsub.s32 %v2121, %v2123
          %v2125 = vrot.slane %v2116, %v2124
          %v2127 = vunpack.c.l.s4 1966171168
          %v2128 = vunpack.c.0.s8 %v2127
          %v2129 = vlaneseq
          %v2130 = vshrl.u32 %v2129, 7
          %v2131 = vsub.s32 %v2128, %v2130
          %v2132 = vrot.slane %v2118, %v2131
          %v2133 = vcombine.high %v2125, %v2125
          %v2134 = vcombine.high %v2132, %v2132
          %v2136 = vunpack.c.l.s4 1966171168
          %v2137 = vunpack.c.0.s8 %v2136
          %v2138 = vlaneseq
          %v2139 = vshrl.u32 %v2138, 7
          %v2140 = vsub.s32 %v2137, %v2139
          %v2141 = vrot.slane %v2125, %v2140
          %v2143 = vunpack.c.l.s4 1966171168
          %v2144 = vunpack.c.0.s8 %v2143
          %v2145 = vlaneseq
          %v2146 = vshrl.u32 %v2145, 7
          %v2147 = vsub.s32 %v2144, %v2146
          %v2148 = vrot.slane %v2132, %v2147
          %v2150 = vunpack.c.l.s4 1966171168
          %v2151 = vunpack.c.0.s8 %v2150
          %v2152 = vlaneseq
          %v2153 = vshrl.u32 %v2152, 7
          %v2154 = vsub.s32 %v2151, %v2153
          %v2155 = vrot.slane %v2133, %v2154
          %v2157 = vunpack.c.l.s4 1966171168
          %v2158 = vunpack.c.0.s8 %v2157
          %v2159 = vlaneseq
          %v2160 = vshrl.u32 %v2159, 7
          %v2161 = vsub.s32 %v2158, %v2160
          %v2162 = vrot.slane %v2134, %v2161
          %v2163 = vcombine.high %v2141, %v2141
          %v2164 = vcombine.high %v2148, %v2148
          %v2165 = vcombine.high %v2155, %v2155
          %v2166 = vcombine.high %v2162, %v2162
          %2175 = vst [vmem:[%s355 + $0x6] sm:$0x1] %v2141
          %2176 = vst [vmem:[%s355 + $0xe] sm:$0x1] %v2155
          %2177 = vst [vmem:[%s355 + $0x16] sm:$0x1] %v2163
          %2178 = vst [vmem:[%s355 + $0x1e] sm:$0x1] %v2165
          %2179 = vst [vmem:[%s355 + $0x26] sm:$0x1] %v2148
          %2180 = vst [vmem:[%s355 + $0x2e] sm:$0x1] %v2162
          %2181 = vst [vmem:[%s355 + $0x36] sm:$0x1] %v2164
          %2182 = vst [vmem:[%s355 + $0x3e] sm:$0x1] %v2166
          %2183 = vset.pattern.permute.xlu0 6
          %2184 = vperm.xlu0 %2183, %v682
          %v2185 = vpop.permute.xlu0 %2184
          %vm2186 = vcmp.eq.s32.totalorder %v2185, 1
          %v2187 = vsel %vm2186, %v2111, %v1937
          %v2188 = vld [vmem:[%s328 + $0x7] sm:$0x1]
          %v2189 = vld [vmem:[%s328 + $0xf] sm:$0x1]
          %v2190 = vld [vmem:[%s328 + $0x17] sm:$0x1]
          %v2191 = vld [vmem:[%s328 + $0x1f] sm:$0x1]
          %v2192 = vld [vmem:[%s328 + $0x27] sm:$0x1]
          %v2193 = vld [vmem:[%s328 + $0x2f] sm:$0x1]
          %v2194 = vld [vmem:[%s328 + $0x37] sm:$0x1]
          %v2195 = vld [vmem:[%s328 + $0x3f] sm:$0x1]
          %v2204 = vrot.slane %v2189, 7
          %v2205 = vsel %vm445, %v2204, %v2188
          %v2206 = vrot.slane %v2190, 6
          %v2207 = vsel %vm448, %v2206, %v2205
          %v2208 = vrot.slane %v2191, 5
          %v2209 = vsel %vm451, %v2208, %v2207
          %v2210 = vrot.slane %v2192, 4
          %v2211 = vsel %vm454, %v2210, %v2209
          %v2212 = vrot.slane %v2193, 3
          %v2213 = vsel %vm457, %v2212, %v2211
          %v2214 = vrot.slane %v2194, 2
          %v2215 = vsel %vm460, %v2214, %v2213
          %v2216 = vrot.slane %v2195, 1
          %v2217 = vsel %vm463, %v2216, %v2215
          %v2218 = vsel %vm465, %v2217, 0
          %2220 = vmatprep.subr.mxu0 0.0
          %2221 = vmatpush1.msra.mxu0 0.0
          %2222 = vmatprep.subr.mxu0 0.0
          %2223 = vmatpush1.msra.mxu0 0.0
          %2224 = vmatprep.subr.mxu0 0.0
          %2225 = vmatpush1.msra.mxu0 0.0
          %2226 = vmatprep.subr.mxu0 0.0
          %2227 = vmatpush1.msra.mxu0 0.0
          %2228 = vmatprep.subr.mxu0 0.0
          %2229 = vmatpush1.msra.mxu0 0.0
          %2230 = vmatprep.subr.mxu0 0.0
          %2231 = vmatpush1.msra.mxu0 0.0
          %2232 = vmatprep.subr.mxu0 0.0
          %2233 = vmatpush1.msra.mxu0 0.0
          %2234 = vmatprep.subr.mxu0 0.0
          %2235 = vmatpush1.msra.mxu0 0.0
          %2236 = vmatprep.subr.mxu0 0.0
          %2237 = vmatpush1.msra.mxu0 0.0
          %2238 = vmatprep.subr.mxu0 0.0
          %2239 = vmatpush1.msra.mxu0 0.0
          %2240 = vmatprep.subr.mxu0 0.0
          %2241 = vmatpush1.msra.mxu0 0.0
          %2242 = vmatprep.subr.mxu0 0.0
          %2243 = vmatpush1.msra.mxu0 0.0
          %2244 = vmatprep.subr.mxu0 0.0
          %2245 = vmatpush1.msra.mxu0 %v402
          %2246 = vmatprep.subr.mxu0 0.0
          %2247 = vmatpush1.msra.mxu0 %v401
          %2248 = vmatprep.subr.mxu0 0.0
          %2249 = vmatpush1.msra.mxu0 %v400
          %2250 = vmatprep.subr.mxu0 0.0
          %2251 = vmatpush1.msra.mxu0 %v399
          %2252 = vmatprep.subr.mxu0 0.0
          %2253 = vmatpush2.msra.mxu0 0.0
          %2254 = vmatprep.subr.mxu0 0.0
          %2255 = vmatpush2.msra.mxu0 0.0
          %2256 = vmatprep.subr.mxu0 0.0
          %2257 = vmatpush2.msra.mxu0 0.0
          %2258 = vmatprep.subr.mxu0 0.0
          %2259 = vmatpush2.msra.mxu0 0.0
          %2260 = vmatprep.subr.mxu0 0.0
          %2261 = vmatpush2.msra.mxu0 0.0
          %2262 = vmatprep.subr.mxu0 0.0
          %2263 = vmatpush2.msra.mxu0 0.0
          %2264 = vmatprep.subr.mxu0 0.0
          %2265 = vmatpush2.msra.mxu0 0.0
          %2266 = vmatprep.subr.mxu0 0.0
          %2267 = vmatpush2.msra.mxu0 0.0
          %2268 = vmatprep.subr.mxu0 0.0
          %2269 = vmatpush2.msra.mxu0 0.0
          %2270 = vmatprep.subr.mxu0 0.0
          %2271 = vmatpush2.msra.mxu0 0.0
          %2272 = vmatprep.subr.mxu0 0.0
          %2273 = vmatpush2.msra.mxu0 0.0
          %2274 = vmatprep.subr.mxu0 0.0
          %2275 = vmatpush2.msra.mxu0 0.0
          %2276 = vmatprep.subr.mxu0 0.0
          %2277 = vmatpush2.msra.mxu0 0.0
          %2278 = vmatprep.subr.mxu0 0.0
          %2279 = vmatpush2.msra.mxu0 0.0
          %2280 = vmatprep.subr.mxu0 0.0
          %2281 = vmatpush2.msra.mxu0 0.0
          %2282 = vmatprep.subr.mxu0 0.0
          %2283 = vmatpush2.msra.mxu0 0.0
          %2284 = vmatprep.mubr.f32.mxu0 0.0
          %2285 = vmatmul.mubr.f32.gmra.mxu0 %v2218
          %v2286 = vpop.f32.mrf.mxu0
          %v2287 = vadd.f32 %v434, %v2286
          %v2288 = vpop.f32.mrf.mxu0
          %2289 = vdwg.mxu0
          %2290 = vmatprep.subr.mxu0 0.0
          %2291 = vmatpush1.msra.mxu0 %v418
          %2292 = vmatprep.subr.mxu0 0.0
          %2293 = vmatpush1.msra.mxu0 %v417
          %2294 = vmatprep.subr.mxu0 0.0
          %2295 = vmatpush1.msra.mxu0 %v416
          %2296 = vmatprep.subr.mxu0 0.0
          %2297 = vmatpush1.msra.mxu0 %v415
          %2298 = vmatprep.subr.mxu0 0.0
          %2299 = vmatpush1.msra.mxu0 %v414
          %2300 = vmatprep.subr.mxu0 0.0
          %2301 = vmatpush1.msra.mxu0 %v413
          %2302 = vmatprep.subr.mxu0 0.0
          %2303 = vmatpush1.msra.mxu0 %v412
          %2304 = vmatprep.subr.mxu0 0.0
          %2305 = vmatpush1.msra.mxu0 %v411
          %2306 = vmatprep.subr.mxu0 0.0
          %2307 = vmatpush1.msra.mxu0 %v410
          %2308 = vmatprep.subr.mxu0 0.0
          %2309 = vmatpush1.msra.mxu0 %v409
          %2310 = vmatprep.subr.mxu0 0.0
          %2311 = vmatpush1.msra.mxu0 %v408
          %2312 = vmatprep.subr.mxu0 0.0
          %2313 = vmatpush1.msra.mxu0 %v407
          %2314 = vmatprep.subr.mxu0 0.0
          %2315 = vmatpush1.msra.mxu0 %v406
          %2316 = vmatprep.subr.mxu0 0.0
          %2317 = vmatpush1.msra.mxu0 %v405
          %2318 = vmatprep.subr.mxu0 0.0
          %2319 = vmatpush1.msra.mxu0 %v404
          %2320 = vmatprep.subr.mxu0 0.0
          %2321 = vmatpush1.msra.mxu0 %v403
          %2322 = vmatprep.subr.mxu0 0.0
          %2323 = vmatpush2.msra.mxu0 0.0
          %2324 = vmatprep.subr.mxu0 0.0
          %2325 = vmatpush2.msra.mxu0 0.0
          %2326 = vmatprep.subr.mxu0 0.0
          %2327 = vmatpush2.msra.mxu0 0.0
          %2328 = vmatprep.subr.mxu0 0.0
          %2329 = vmatpush2.msra.mxu0 0.0
          %2330 = vmatprep.subr.mxu0 0.0
          %2331 = vmatpush2.msra.mxu0 0.0
          %2332 = vmatprep.subr.mxu0 0.0
          %2333 = vmatpush2.msra.mxu0 0.0
          %2334 = vmatprep.subr.mxu0 0.0
          %2335 = vmatpush2.msra.mxu0 0.0
          %2336 = vmatprep.subr.mxu0 0.0
          %2337 = vmatpush2.msra.mxu0 0.0
          %2338 = vmatprep.subr.mxu0 0.0
          %2339 = vmatpush2.msra.mxu0 0.0
          %2340 = vmatprep.subr.mxu0 0.0
          %2341 = vmatpush2.msra.mxu0 0.0
          %2342 = vmatprep.subr.mxu0 0.0
          %2343 = vmatpush2.msra.mxu0 0.0
          %2344 = vmatprep.subr.mxu0 0.0
          %2345 = vmatpush2.msra.mxu0 0.0
          %2346 = vmatprep.subr.mxu0 0.0
          %2347 = vmatpush2.msra.mxu0 0.0
          %2348 = vmatprep.subr.mxu0 0.0
          %2349 = vmatpush2.msra.mxu0 0.0
          %2350 = vmatprep.subr.mxu0 0.0
          %2351 = vmatpush2.msra.mxu0 0.0
          %2352 = vmatprep.subr.mxu0 0.0
          %2353 = vmatpush2.msra.mxu0 0.0
          %2354 = vmatprep.mubr.f32.mxu0 0.0
          %2355 = vmatmul.mubr.f32.gmra.mxu0 %v2111
          %v2356 = vpop.f32.mrf.mxu0
          %v2357 = vadd.f32 0.0, %v2356
          %v2358 = vpop.f32.mrf.mxu0
          %2359 = vdwg.mxu0
          %v2360 = vadd.f32 %v2287, %v2357
          %v2361 = vtanh.pop %v2360
          %2362 = vset.pattern.permute.xlu0 7
          %2363 = vperm.xlu0 %2362, %v610
          %v2364 = vpop.permute.xlu0 %2363
          %vm2365 = vcmp.eq.s32.totalorder %v2364, 1
          %v2366 = vsel %vm2365, %v2361, 0.0
          %v2368 = vcombine.high %v2366, %v2366
          %v2370 = vunpack.c.l.s4 1966171168
          %v2371 = vunpack.c.0.s8 %v2370
          %v2372 = vlaneseq
          %v2373 = vshrl.u32 %v2372, 7
          %v2374 = vsub.s32 %v2371, %v2373
          %v2375 = vrot.slane %v2366, %v2374
          %v2377 = vunpack.c.l.s4 1966171168
          %v2378 = vunpack.c.0.s8 %v2377
          %v2379 = vlaneseq
          %v2380 = vshrl.u32 %v2379, 7
          %v2381 = vsub.s32 %v2378, %v2380
          %v2382 = vrot.slane %v2368, %v2381
          %v2383 = vcombine.high %v2375, %v2375
          %v2384 = vcombine.high %v2382, %v2382
          %v2386 = vunpack.c.l.s4 1966171168
          %v2387 = vunpack.c.0.s8 %v2386
          %v2388 = vlaneseq
          %v2389 = vshrl.u32 %v2388, 7
          %v2390 = vsub.s32 %v2387, %v2389
          %v2391 = vrot.slane %v2375, %v2390
          %v2393 = vunpack.c.l.s4 1966171168
          %v2394 = vunpack.c.0.s8 %v2393
          %v2395 = vlaneseq
          %v2396 = vshrl.u32 %v2395, 7
          %v2397 = vsub.s32 %v2394, %v2396
          %v2398 = vrot.slane %v2382, %v2397
          %v2400 = vunpack.c.l.s4 1966171168
          %v2401 = vunpack.c.0.s8 %v2400
          %v2402 = vlaneseq
          %v2403 = vshrl.u32 %v2402, 7
          %v2404 = vsub.s32 %v2401, %v2403
          %v2405 = vrot.slane %v2383, %v2404
          %v2407 = vunpack.c.l.s4 1966171168
          %v2408 = vunpack.c.0.s8 %v2407
          %v2409 = vlaneseq
          %v2410 = vshrl.u32 %v2409, 7
          %v2411 = vsub.s32 %v2408, %v2410
          %v2412 = vrot.slane %v2384, %v2411
          %v2413 = vcombine.high %v2391, %v2391
          %v2414 = vcombine.high %v2398, %v2398
          %v2415 = vcombine.high %v2405, %v2405
          %v2416 = vcombine.high %v2412, %v2412
          %2425 = vst [vmem:[%s355 + $0x7] sm:$0x1] %v2391
          %2426 = vst [vmem:[%s355 + $0xf] sm:$0x1] %v2405
          %2427 = vst [vmem:[%s355 + $0x17] sm:$0x1] %v2413
          %2428 = vst [vmem:[%s355 + $0x1f] sm:$0x1] %v2415
          %2429 = vst [vmem:[%s355 + $0x27] sm:$0x1] %v2398
          %2430 = vst [vmem:[%s355 + $0x2f] sm:$0x1] %v2412
          %2431 = vst [vmem:[%s355 + $0x37] sm:$0x1] %v2414
          %2432 = vst [vmem:[%s355 + $0x3f] sm:$0x1] %v2416
          %2433 = vset.pattern.permute.xlu0 7
          %2434 = vperm.xlu0 %2433, %v682
          %v2435 = vpop.permute.xlu0 %2434
          %vm2436 = vcmp.eq.s32.totalorder %v2435, 1
          %v2437 = vsel %vm2436, %v2361, %v2187
          %2438 = vst [vmem:[#allocation2] sm:$0xff] %v2361
          %2439 = vst [vmem:[%s375] sm:$0xff] %v2437
        $region86: #{sequence_encoder_forward.1} parent=73 // pred_fallthru
          _
        %p2440 = scmp.ge.s32.totalorder %s25, %s382
        // Predicated region
        $region87: #{sequence_encoder_forward.1} parent=73 // pred_check
          %p2441 = pneg %p2440
        $region88: #{sequence_encoder_forward.1} parent=73 // pred_check_branch
          %2443 = sbr.rel (%p2441) target = $region90
        $region89: #{sequence_encoder_forward.1} parent=73 // pred_region
          %2444 = vst [vmem:[%s355] sm:$0xff] 0.0
          %2445 = vst [vmem:[%s355 + $0x8] sm:$0xff] 0.0
          %2446 = vst [vmem:[%s355 + $0x10] sm:$0xff] 0.0
          %2447 = vst [vmem:[%s355 + $0x18] sm:$0xff] 0.0
          %2448 = vst [vmem:[%s355 + $0x20] sm:$0xff] 0.0
          %2449 = vst [vmem:[%s355 + $0x28] sm:$0xff] 0.0
          %2450 = vst [vmem:[%s355 + $0x30] sm:$0xff] 0.0
          %2451 = vst [vmem:[%s355 + $0x38] sm:$0xff] 0.0
        $region90: #{sequence_encoder_forward.1} parent=73 // pred_fallthru
          _
        %s2452 = sand.u32 %s167, 1
        %s2453 = sand.u32 %s167, 1
        %s2454 = smul.addr %s2453, 64
        %s2455 = scalar_lea.vmem [#allocation6], %s2454
        %p2456 = scmp.lt.s32.totalorder %s24, 0
        %s2457 = scalar_select %p2456, %s24, 0
        %s2458 = smul.addr %s2457, 8
        %s2459 = scalar_lea.vmem %s7, %s2458
        // Predicated region
        $region91: #{sequence_encoder_forward.1} parent=73 // pred_check
          %p2460 = pneg %p177
        $region92: #{sequence_encoder_forward.1} parent=73 // pred_check_branch
          %2462 = sbr.rel (%p2460) target = $region94
        $region93: #{sequence_encoder_forward.1} parent=73 // pred_region
          %s2463 = smul.u32 8, %s24
          %s2464 = smul.addr %s2463, 2
          %s2465 = sadd.s32 %s25, %s2464
          %s2466 = smul.addr %s2465, 8
          %s2467 = scalar_lea.vmem %s6, %s2466
          // Predicated region
          $region95: #{sequence_encoder_forward.1} parent=93 // pred_check
            _
          $region96: #{sequence_encoder_forward.1} parent=93 // pred_check_branch
            %2469 = sbr.rel (0) target = $region98
          $region97: #{sequence_encoder_forward.1} parent=93 // pred_region
            // Predicated region
            $region99: #{sequence_encoder_forward.1} parent=97 // pred_check
              _
            $region100: #{sequence_encoder_forward.1} parent=97 // pred_check_branch
              %2471 = sbr.rel (0) target = $region102
            $region101: #{sequence_encoder_forward.1} parent=97 // pred_region
              // Predicated region
              $region114: #{sequence_encoder_forward.1} parent=101 // pred_check
                _
              $region115: #{sequence_encoder_forward.1} parent=101 // pred_check_branch
                %2501 = sbr.rel (0) target = $region117
              $region116: #{sequence_encoder_forward.1} parent=101 // pred_region
                loop: start=0, step=1, limit=1
                $region118: #{sequence_encoder_forward.1} parent=116 // loop_pre_header
                  _
                $region119: #{sequence_encoder_forward.1} parent=116 // loop_header
                  %s2503 = sphi 0, %s2507
                  %p2504 = scmp.ge.s32.totalorder %s2503, 1
                  %s2508 = sphi %s2455, %s2455
                  %s2509 = sphi %s2467, %s2467
                $region120: #{sequence_encoder_forward.1} parent=116 // loop_header_branch
                  %2506 = sbr.rel (%p2504) target = $region124
                $region121: #{sequence_encoder_forward.1} parent=116 // loop_body
                  %v2510 = vld [vmem:[%s2508] sm:$0xff]
                  %2511 = vst [vmem:[%s2509] sm:$0xff] %v2510
                  %v2512 = vld [vmem:[%s2508 + $0x8] sm:$0xff]
                  %2513 = vst [vmem:[%s2509 + $0x10] sm:$0xff] %v2512
                  %v2514 = vld [vmem:[%s2508 + $0x10] sm:$0xff]
                  %2515 = vst [vmem:[%s2509 + $0x20] sm:$0xff] %v2514
                  %v2516 = vld [vmem:[%s2508 + $0x18] sm:$0xff]
                  %2517 = vst [vmem:[%s2509 + $0x30] sm:$0xff] %v2516
                  %v2518 = vld [vmem:[%s2508 + $0x20] sm:$0xff]
                  %2519 = vst [vmem:[%s2509 + $0x40] sm:$0xff] %v2518
                  %v2520 = vld [vmem:[%s2508 + $0x28] sm:$0xff]
                  %2521 = vst [vmem:[%s2509 + $0x50] sm:$0xff] %v2520
                  %v2522 = vld [vmem:[%s2508 + $0x30] sm:$0xff]
                  %2523 = vst [vmem:[%s2509 + $0x60] sm:$0xff] %v2522
                  %v2524 = vld [vmem:[%s2508 + $0x38] sm:$0xff]
                  %2525 = vst [vmem:[%s2509 + $0x70] sm:$0xff] %v2524
                $region122: #{sequence_encoder_forward.1} parent=116 // loop_footer
                  %s2507 = sadd.s32 1, %s2503
                $region123: #{sequence_encoder_forward.1} parent=116 // loop_footer_branch
                  %2502 = sbr.rel target = $region119
                $region124: #{sequence_encoder_forward.1} parent=116 // loop_exit
                  _
              $region117: #{sequence_encoder_forward.1} parent=101 // pred_fallthru
                _
              // Predicated region
              $region125: #{sequence_encoder_forward.1} parent=101 // pred_check
                _
              $region126: #{sequence_encoder_forward.1} parent=101 // pred_check_branch
                %2527 = sbr.rel target = $region128
              $region127: #{sequence_encoder_forward.1} parent=101 // pred_region
                _
              $region128: #{sequence_encoder_forward.1} parent=101 // pred_fallthru
                _
            $region102: #{sequence_encoder_forward.1} parent=97 // pred_fallthru
              _
            // Predicated region
            $region103: #{sequence_encoder_forward.1} parent=97 // pred_check
              _
            $region104: #{sequence_encoder_forward.1} parent=97 // pred_check_branch
              %2473 = sbr.rel target = $region106
            $region105: #{sequence_encoder_forward.1} parent=97 // pred_region
              %s2475 = ssub.s32 256, 1
              loop: start=0, step=1, limit=1
              $region107: #{sequence_encoder_forward.1} parent=105 // loop_pre_header
                _
              $region108: #{sequence_encoder_forward.1} parent=105 // loop_header
                %s2477 = sphi 0, %s2481
                %p2478 = scmp.ge.s32.totalorder %s2477, 1
                %s2482 = sphi %s2455, %s2455
                %s2483 = sphi %s2467, %s2467
              $region109: #{sequence_encoder_forward.1} parent=105 // loop_header_branch
                %2480 = sbr.rel (%p2478) target = $region113
              $region110: #{sequence_encoder_forward.1} parent=105 // loop_body
                %v2484 = vld [vmem:[%s2482] sm:%s2475]
                %2485 = vst [vmem:[%s2483] sm:%s2475] %v2484
                %v2486 = vld [vmem:[%s2482 + $0x8] sm:%s2475]
                %2487 = vst [vmem:[%s2483 + $0x10] sm:%s2475] %v2486
                %v2488 = vld [vmem:[%s2482 + $0x10] sm:%s2475]
                %2489 = vst [vmem:[%s2483 + $0x20] sm:%s2475] %v2488
                %v2490 = vld [vmem:[%s2482 + $0x18] sm:%s2475]
                %2491 = vst [vmem:[%s2483 + $0x30] sm:%s2475] %v2490
                %v2492 = vld [vmem:[%s2482 + $0x20] sm:%s2475]
                %2493 = vst [vmem:[%s2483 + $0x40] sm:%s2475] %v2492
                %v2494 = vld [vmem:[%s2482 + $0x28] sm:%s2475]
                %2495 = vst [vmem:[%s2483 + $0x50] sm:%s2475] %v2494
                %v2496 = vld [vmem:[%s2482 + $0x30] sm:%s2475]
                %2497 = vst [vmem:[%s2483 + $0x60] sm:%s2475] %v2496
                %v2498 = vld [vmem:[%s2482 + $0x38] sm:%s2475]
                %2499 = vst [vmem:[%s2483 + $0x70] sm:%s2475] %v2498
              $region111: #{sequence_encoder_forward.1} parent=105 // loop_footer
                %s2481 = sadd.s32 1, %s2477
              $region112: #{sequence_encoder_forward.1} parent=105 // loop_footer_branch
                %2476 = sbr.rel target = $region108
              $region113: #{sequence_encoder_forward.1} parent=105 // loop_exit
                _
            $region106: #{sequence_encoder_forward.1} parent=97 // pred_fallthru
              _
          $region98: #{sequence_encoder_forward.1} parent=93 // pred_fallthru
            _
          %2528 = vnop
        $region94: #{sequence_encoder_forward.1} parent=73 // pred_fallthru
          _
        // Predicated region
        $region129: #{sequence_encoder_forward.1} parent=73 // pred_check
          %p2529 = pneg %p203
        $region130: #{sequence_encoder_forward.1} parent=73 // pred_check_branch
          %2531 = sbr.rel (%p2529) target = $region132
        $region131: #{sequence_encoder_forward.1} parent=73 // pred_region
          _
        $region132: #{sequence_encoder_forward.1} parent=73 // pred_fallthru
          _
        // Predicated region
        $region133: #{sequence_encoder_forward.1} parent=73 // pred_check
          %p2532 = pneg %p203
        $region134: #{sequence_encoder_forward.1} parent=73 // pred_check_branch
          %2534 = sbr.rel (%p2532) target = $region136
        $region135: #{sequence_encoder_forward.1} parent=73 // pred_region
          %p2535 = scmp.lt.s32.totalorder %s24, 0
          %s2536 = scalar_select %p2535, %s24, 0
          %s2537 = smul.addr %s2536, 8
          %s2538 = scalar_lea.vmem %s7, %s2537
        $region136: #{sequence_encoder_forward.1} parent=73 // pred_fallthru
          _
      $region74: #{sequence_encoder_forward.1} parent=5 // pred_fallthru
        _
      %p2539 = scmp.le.s32.totalorder 2, %s15
      // Predicated region
      $region137: #{sequence_encoder_forward.1} parent=5 // pred_check
        %p2540 = pneg %p2539
      $region138: #{sequence_encoder_forward.1} parent=5 // pred_check_branch
        %2542 = sbr.rel (%p2540) target = $region140
      $region139: #{sequence_encoder_forward.1} parent=5 // pred_region
        %s2543 = ssub.s32 %s15, 2
        // Predicated region
        $region141: #{sequence_encoder_forward.1} parent=139 // pred_check
          %p2544 = pneg %p183
        $region142: #{sequence_encoder_forward.1} parent=139 // pred_check_branch
          %2546 = sbr.rel (%p2544) target = $region144
        $region143: #{sequence_encoder_forward.1} parent=139 // pred_region
          %s2547 = sand.u32 %s168, 1
          %s2548 = sand.u32 %s168, 1
          %s2549 = smul.addr %s2548, 64
          %s2550 = scalar_lea.vmem [#allocation6], %s2549
        $region144: #{sequence_encoder_forward.1} parent=139 // pred_fallthru
          _
      $region140: #{sequence_encoder_forward.1} parent=5 // pred_fallthru
        _
    $region6: #{sequence_encoder_forward.1} parent=1 // loop_footer
      %s19 = sadd.s32 1, %s15
    $region7: #{sequence_encoder_forward.1} parent=1 // loop_footer_branch
      %14 = sbr.rel target = $region3
    $region8: #{sequence_encoder_forward.1} parent=1 // loop_exit
      _

</llo_original>
